<compile_context>
chip_gen: v6e
topology: v6e:2x2x1
jax: 0.10.0
libtpu: 0.0.40
codegen_flags: <defaults>
</compile_context>

<pallas_src>
import functools

import jax
import jax.numpy as jnp
from jax.experimental import pallas as pl
from jax.experimental.pallas import tpu as pltpu


def _round_up(x: int, m: int) -> int:
    return (x + m - 1) // m * m


def _leaky_relu(v, slope=0.01):
    # torch.nn.LeakyReLU default negative_slope = 0.01
    return jnp.where(v > 0, v, slope * v)


def _choose_tile_b(B: int, F_pad: int, h1p: int) -> int:
    """Pick a 128-multiple batch tile that amortizes per-step overhead while
    keeping double-buffered x + the widest f32 intermediate under ~20 MiB."""
    per_row = 8 * F_pad + 6 * h1p          # 2x f32 x tile + f32/bf16 h1 intermediate
    budget = 20 * 1024 * 1024
    t = max(128, min(4096, budget // per_row))
    t = (t // 128) * 128
    t = min(t, _round_up(B, 128))          # don't over-pad small batches
    # Keep >= 2 grid steps when possible so v7x's two TensorCores both get work
    # (and the DMA/compute pipeline has something to overlap).
    if pl.cdiv(B, t) == 1 and t > 128:
        t = max(128, _round_up(t // 2, 128))
    return t


def verifying_sd_kernel(x_ref,
                        w1_ref, b1_ref,
                        w2_ref, b2_ref,
                        w3_ref, b3_ref,
                        w4t_ref, b4_ref,
                        o_ref):
    # x_ref: (tile_b, F_pad) f32 streamed directly from HBM; cast to bf16 here on
    # the VPU (avoids a separate XLA pad/astype round trip through HBM).
    x = x_ref[...].astype(jnp.bfloat16)

    # block_1: Linear + LeakyReLU + Dropout(0.25) (identity in eval mode)
    # TODO(synk): training-mode Dropout would need pltpu.prng_seed/prng_random_bits;
    # eval-mode (identity) is implemented here.
    h = jnp.dot(x, w1_ref[...], preferred_element_type=jnp.float32) + b1_ref[...]
    h = _leaky_relu(h).astype(jnp.bfloat16)

    # block_2: Linear + LeakyReLU
    h = jnp.dot(h, w2_ref[...], preferred_element_type=jnp.float32) + b2_ref[...]
    h = _leaky_relu(h).astype(jnp.bfloat16)

    # block_3: Linear + LeakyReLU
    h = jnp.dot(h, w3_ref[...], preferred_element_type=jnp.float32) + b3_ref[...]
    h = _leaky_relu(h).astype(jnp.bfloat16)

    # block_4: Linear(0.25F -> 1), computed transposed on the MXU:
    #   yt[n, b] = sum_k w4t[n, k] * h[b, k]
    # so the per-tile result has batch on the 128-lane axis (lane-dense store).
    yt = jax.lax.dot_general(w4t_ref[...], h,
                             (((1,), (1,)), ((), ())),
                             preferred_element_type=jnp.float32)   # (16, tile_b)
    o_ref[...] = (yt[0:1, :] + b4_ref[...]).astype(o_ref.dtype)    # (1, tile_b)


def prepare_params(params):
    """One-time pad/cast of weights & biases (hoisted out of the per-call path).
    params: w1..w4 in (in, out) layout, b1..b4 of shape (out,)."""
    F, h1 = params["w1"].shape
    h2 = params["w2"].shape[1]
    h3 = params["w3"].shape[1]
    F_pad, h1p, h2p, h3p = (_round_up(d, 128) for d in (F, h1, h2, h3))

    def pad2(a, rows, cols, dtype):
        a = a.astype(dtype)
        return jnp.pad(a, ((0, rows - a.shape[0]), (0, cols - a.shape[1])))

    return {
        "w1": pad2(params["w1"], F_pad, h1p, jnp.bfloat16),
        "b1": pad2(params["b1"].reshape(1, -1), 1, h1p, jnp.float32),
        "w2": pad2(params["w2"], h1p, h2p, jnp.bfloat16),
        "b2": pad2(params["b2"].reshape(1, -1), 1, h2p, jnp.float32),
        "w3": pad2(params["w3"], h2p, h3p, jnp.bfloat16),
        "b3": pad2(params["b3"].reshape(1, -1), 1, h3p, jnp.float32),
        # Final layer stored transposed, padded to 16 sublanes (bf16 packing);
        # only row 0 is real.
        "w4t": pad2(params["w4"].T, 16, h3p, jnp.bfloat16),
        "b4": params["b4"].reshape(1, 1).astype(jnp.float32),
    }


@functools.partial(jax.jit, static_argnames=("tile_b",))
def verifying_sd_forward(x, prepped, *, tile_b=None):
    """x: (B, F) float32.  prepped: output of prepare_params()."""
    B, F = x.shape
    F_pad, h1p = prepped["w1"].shape

    if tile_b is None:
        tile_b = _choose_tile_b(B, F_pad, h1p)
    tile_b = max(128, _round_up(tile_b, 128))

    # Only the feature axis ever needs explicit (zero) padding, and only when F
    # is not already lane-aligned; x stays f32 and unpadded along batch.
    if F_pad != F:
        x = jnp.pad(x, ((0, 0), (0, F_pad - F)))

    grid_b = pl.cdiv(B, tile_b)
    B_out = grid_b * tile_b   # output fully covered; tail lanes sliced off below

    def whole(a):  # constant index_map -> stays VMEM-resident across grid steps
        return pl.BlockSpec(a.shape, lambda i: (0, 0))

    out = pl.pallas_call(
        verifying_sd_kernel,
        out_shape=jax.ShapeDtypeStruct((1, B_out), jnp.float32),
        grid_spec=pltpu.PrefetchScalarGridSpec(
            num_scalar_prefetch=0,
            grid=(grid_b,),
            in_specs=[
                pl.BlockSpec((tile_b, F_pad), lambda i: (i, 0)),   # X batch tile (f32)
                whole(prepped["w1"]), whole(prepped["b1"]),
                whole(prepped["w2"]), whole(prepped["b2"]),
                whole(prepped["w3"]), whole(prepped["b3"]),
                whole(prepped["w4t"]), whole(prepped["b4"]),
            ],
            out_specs=pl.BlockSpec((1, tile_b), lambda i: (0, i)),  # lane-dense out
        ),
        compiler_params=pltpu.CompilerParams(
            dimension_semantics=("parallel",),
            vmem_limit_bytes=32 * 1024 * 1024),
    )(x, prepped["w1"], prepped["b1"], prepped["w2"], prepped["b2"],
      prepped["w3"], prepped["b3"], prepped["w4t"], prepped["b4"])

    return out[0, :B].reshape(B, 1)


def init_params(key, features_length):
    h1 = int(features_length * 0.75)
    h2 = int(features_length * 0.5)
    h3 = int(features_length * 0.25)
    dims = [(features_length, h1), (h1, h2), (h2, h3), (h3, 1)]
    params = {}
    for idx, (fan_in, fan_out) in enumerate(dims, start=1):
        key, kw, kb = jax.random.split(key, 3)
        bound = 1.0 / (fan_in ** 0.5)  # PyTorch Linear default init range
        params[f"w{idx}"] = jax.random.uniform(
            kw, (fan_in, fan_out), jnp.float32, -bound, bound)
        params[f"b{idx}"] = jax.random.uniform(
            kb, (fan_out,), jnp.float32, -bound, bound)
    return params


def _bf16_linear(h, w, b):
    # Mirrors the kernel numerics: bf16 operands, f32 accumulation, f32 bias add.
    return jnp.dot(h.astype(jnp.bfloat16), w.astype(jnp.bfloat16),
                   preferred_element_type=jnp.float32) + b


def reference_forward(x, params):
    h = _leaky_relu(_bf16_linear(x, params["w1"], params["b1"]))
    h = _leaky_relu(_bf16_linear(h, params["w2"], params["b2"]))
    h = _leaky_relu(_bf16_linear(h, params["w3"], params["b3"]))
    return _bf16_linear(h, params["w4"], params["b4"])


if __name__ == "__main__":
    features_length = 128          # -> hidden dims 96, 64, 32, 1
    batch = 300                    # not 128-aligned: exercises the partial last tile

    key = jax.random.PRNGKey(0)
    key, kx = jax.random.split(key)
    x = jax.random.normal(kx, (batch, features_length), jnp.float32)
    params = init_params(key, features_length)
    prepped = prepare_params(params)   # one-time pad/cast, reused across calls

    ref = reference_forward(x, params)

    out = jax.block_until_ready(verifying_sd_forward(x, prepped))
    assert out.shape == (batch, 1)
    assert jnp.allclose(out, ref, atol=2e-3, rtol=2e-3), "mismatch vs reference"

    # Multi-step grid path (3 batch tiles) must agree too.
    out2 = jax.block_until_ready(verifying_sd_forward(x, prepped, tile_b=128))
    assert jnp.allclose(out2, ref, atol=2e-3, rtol=2e-3), "mismatch (tile_b=128)"

    print("KERNEL_OK")
</pallas_src>

<mosaic_0001>
module attributes {stable_mosaic.version = 11 : i64} {
  func.func @verifying_sd_kernel(%arg0: i32, %arg1: memref<256x128xf32, #tpu.memory_space<vmem>>, %arg2: memref<128x128xbf16, #tpu.memory_space<vmem>>, %arg3: memref<1x128xf32, #tpu.memory_space<vmem>>, %arg4: memref<128x128xbf16, #tpu.memory_space<vmem>>, %arg5: memref<1x128xf32, #tpu.memory_space<vmem>>, %arg6: memref<128x128xbf16, #tpu.memory_space<vmem>>, %arg7: memref<1x128xf32, #tpu.memory_space<vmem>>, %arg8: memref<16x128xbf16, #tpu.memory_space<vmem>>, %arg9: memref<1x1xf32, #tpu.memory_space<vmem>>, %arg10: memref<1x256xf32, #tpu.memory_space<vmem>>) attributes {dimension_semantics = [#tpu.dimension_semantics<parallel>], iteration_bounds = array<i64: 2>, scalar_prefetch = 0 : i64, scratch_operands = 0 : i64, tpu.core_type = #tpu.core_type<tc>, window_params = [{transform_indices = @transform_0, window_bounds = array<i64: 256, 128>}, {pipeline_mode = #tpu.pipeline_mode<synchronous>, transform_indices = @transform_1, window_bounds = array<i64: 128, 128>}, {pipeline_mode = #tpu.pipeline_mode<synchronous>, transform_indices = @transform_2, window_bounds = array<i64: 1, 128>}, {pipeline_mode = #tpu.pipeline_mode<synchronous>, transform_indices = @transform_3, window_bounds = array<i64: 128, 128>}, {pipeline_mode = #tpu.pipeline_mode<synchronous>, transform_indices = @transform_4, window_bounds = array<i64: 1, 128>}, {pipeline_mode = #tpu.pipeline_mode<synchronous>, transform_indices = @transform_5, window_bounds = array<i64: 128, 128>}, {pipeline_mode = #tpu.pipeline_mode<synchronous>, transform_indices = @transform_6, window_bounds = array<i64: 1, 128>}, {pipeline_mode = #tpu.pipeline_mode<synchronous>, transform_indices = @transform_7, window_bounds = array<i64: 16, 128>}, {pipeline_mode = #tpu.pipeline_mode<synchronous>, transform_indices = @transform_8, window_bounds = array<i64: 1, 1>}, {transform_indices = @transform_9, window_bounds = array<i64: 1, 256>}]} {
    %c0 = arith.constant 0 : index
    %c0_0 = arith.constant 0 : index
    %0 = vector.load %arg1[%c0, %c0_0] : memref<256x128xf32, #tpu.memory_space<vmem>>, vector<256x128xf32>
    %1 = arith.truncf %0 : vector<256x128xf32> to vector<256x128xbf16>
    %c0_1 = arith.constant 0 : index
    %c0_2 = arith.constant 0 : index
    %2 = vector.load %arg2[%c0_1, %c0_2] : memref<128x128xbf16, #tpu.memory_space<vmem>>, vector<128x128xbf16>
    %cst = arith.constant dense<0.000000e+00> : vector<256x128xf32>
    %3 = tpu.matmul %1, %2, %cst {dimension_numbers = #tpu.dot_dimension_numbers<[1], [0], [0], [1], [0, 0, 1, 1], [], []>} : vector<256x128xbf16>, vector<128x128xbf16>, vector<256x128xf32> -> vector<256x128xf32>
    %c0_3 = arith.constant 0 : index
    %c0_4 = arith.constant 0 : index
    %4 = vector.load %arg3[%c0_3, %c0_4] : memref<1x128xf32, #tpu.memory_space<vmem>>, vector<1x128xf32>
    %5 = vector.broadcast %4 : vector<1x128xf32> to vector<256x128xf32>
    %6 = arith.addf %3, %5 : vector<256x128xf32>
    %cst_5 = arith.constant 0.000000e+00 : f32
    %7 = vector.broadcast %cst_5 : f32 to vector<256x128xf32>
    %8 = arith.cmpf ogt, %6, %7 : vector<256x128xf32>
    %cst_6 = arith.constant 0.00999999977 : f32
    %9 = vector.broadcast %cst_6 : f32 to vector<256x128xf32>
    %10 = arith.mulf %9, %6 : vector<256x128xf32>
    %11 = arith.select %8, %6, %10 : vector<256x128xi1>, vector<256x128xf32>
    %12 = arith.truncf %11 : vector<256x128xf32> to vector<256x128xbf16>
    %c0_7 = arith.constant 0 : index
    %c0_8 = arith.constant 0 : index
    %13 = vector.load %arg4[%c0_7, %c0_8] : memref<128x128xbf16, #tpu.memory_space<vmem>>, vector<128x128xbf16>
    %cst_9 = arith.constant dense<0.000000e+00> : vector<256x128xf32>
    %14 = tpu.matmul %12, %13, %cst_9 {dimension_numbers = #tpu.dot_dimension_numbers<[1], [0], [0], [1], [0, 0, 1, 1], [], []>} : vector<256x128xbf16>, vector<128x128xbf16>, vector<256x128xf32> -> vector<256x128xf32>
    %c0_10 = arith.constant 0 : index
    %c0_11 = arith.constant 0 : index
    %15 = vector.load %arg5[%c0_10, %c0_11] : memref<1x128xf32, #tpu.memory_space<vmem>>, vector<1x128xf32>
    %16 = vector.broadcast %15 : vector<1x128xf32> to vector<256x128xf32>
    %17 = arith.addf %14, %16 : vector<256x128xf32>
    %cst_12 = arith.constant 0.000000e+00 : f32
    %18 = vector.broadcast %cst_12 : f32 to vector<256x128xf32>
    %19 = arith.cmpf ogt, %17, %18 : vector<256x128xf32>
    %cst_13 = arith.constant 0.00999999977 : f32
    %20 = vector.broadcast %cst_13 : f32 to vector<256x128xf32>
    %21 = arith.mulf %20, %17 : vector<256x128xf32>
    %22 = arith.select %19, %17, %21 : vector<256x128xi1>, vector<256x128xf32>
    %23 = arith.truncf %22 : vector<256x128xf32> to vector<256x128xbf16>
    %c0_14 = arith.constant 0 : index
    %c0_15 = arith.constant 0 : index
    %24 = vector.load %arg6[%c0_14, %c0_15] : memref<128x128xbf16, #tpu.memory_space<vmem>>, vector<128x128xbf16>
    %cst_16 = arith.constant dense<0.000000e+00> : vector<256x128xf32>
    %25 = tpu.matmul %23, %24, %cst_16 {dimension_numbers = #tpu.dot_dimension_numbers<[1], [0], [0], [1], [0, 0, 1, 1], [], []>} : vector<256x128xbf16>, vector<128x128xbf16>, vector<256x128xf32> -> vector<256x128xf32>
    %c0_17 = arith.constant 0 : index
    %c0_18 = arith.constant 0 : index
    %26 = vector.load %arg7[%c0_17, %c0_18] : memref<1x128xf32, #tpu.memory_space<vmem>>, vector<1x128xf32>
    %27 = vector.broadcast %26 : vector<1x128xf32> to vector<256x128xf32>
    %28 = arith.addf %25, %27 : vector<256x128xf32>
    %cst_19 = arith.constant 0.000000e+00 : f32
    %29 = vector.broadcast %cst_19 : f32 to vector<256x128xf32>
    %30 = arith.cmpf ogt, %28, %29 : vector<256x128xf32>
    %cst_20 = arith.constant 0.00999999977 : f32
    %31 = vector.broadcast %cst_20 : f32 to vector<256x128xf32>
    %32 = arith.mulf %31, %28 : vector<256x128xf32>
    %33 = arith.select %30, %28, %32 : vector<256x128xi1>, vector<256x128xf32>
    %34 = arith.truncf %33 : vector<256x128xf32> to vector<256x128xbf16>
    %c0_21 = arith.constant 0 : index
    %c0_22 = arith.constant 0 : index
    %35 = vector.load %arg8[%c0_21, %c0_22] : memref<16x128xbf16, #tpu.memory_space<vmem>>, vector<16x128xbf16>
    %cst_23 = arith.constant dense<0.000000e+00> : vector<16x256xf32>
    %36 = tpu.matmul %35, %34, %cst_23 {dimension_numbers = #tpu.dot_dimension_numbers<[1], [1], [0], [0], [0, 0, 1, 0], [], []>} : vector<16x128xbf16>, vector<256x128xbf16>, vector<16x256xf32> -> vector<16x256xf32>
    %37 = vector.extract_strided_slice %36 {offsets = [0, 0], sizes = [1, 256], strides = [1, 1]} : vector<16x256xf32> to vector<1x256xf32>
    %c0_24 = arith.constant 0 : index
    %c0_25 = arith.constant 0 : index
    %38 = vector.load %arg9[%c0_24, %c0_25] : memref<1x1xf32, #tpu.memory_space<vmem>>, vector<1x1xf32>
    %39 = vector.broadcast %38 : vector<1x1xf32> to vector<1x256xf32>
    %40 = arith.addf %37, %39 : vector<1x256xf32>
    %c0_26 = arith.constant 0 : index
    %c0_27 = arith.constant 0 : index
    %41 = vector.load %arg10[%c0_26, %c0_27] : memref<1x256xf32, #tpu.memory_space<vmem>>, vector<1x256xf32>
    tpu.vector_store %arg10[%c0_26, %c0_27], %40 {strides = array<i32>} : memref<1x256xf32, #tpu.memory_space<vmem>>, vector<1x256xf32>,
    return
  }
  func.func @transform_0(%arg0: i32) -> (i32, i32) {
    %c0_i32 = arith.constant 0 : i32
    %c0_i32_0 = arith.constant 0 : i32
    return %arg0, %c0_i32 : i32, i32
  }
  func.func @transform_1(%arg0: i32) -> (i32, i32) {
    %c0_i32 = arith.constant 0 : i32
    %c0_i32_0 = arith.constant 0 : i32
    %c0_i32_1 = arith.constant 0 : i32
    return %c0_i32, %c0_i32_0 : i32, i32
  }
  func.func @transform_2(%arg0: i32) -> (i32, i32) {
    %c0_i32 = arith.constant 0 : i32
    %c0_i32_0 = arith.constant 0 : i32
    %c0_i32_1 = arith.constant 0 : i32
    return %c0_i32, %c0_i32_0 : i32, i32
  }
  func.func @transform_3(%arg0: i32) -> (i32, i32) {
    %c0_i32 = arith.constant 0 : i32
    %c0_i32_0 = arith.constant 0 : i32
    %c0_i32_1 = arith.constant 0 : i32
    return %c0_i32, %c0_i32_0 : i32, i32
  }
  func.func @transform_4(%arg0: i32) -> (i32, i32) {
    %c0_i32 = arith.constant 0 : i32
    %c0_i32_0 = arith.constant 0 : i32
    %c0_i32_1 = arith.constant 0 : i32
    return %c0_i32, %c0_i32_0 : i32, i32
  }
  func.func @transform_5(%arg0: i32) -> (i32, i32) {
    %c0_i32 = arith.constant 0 : i32
    %c0_i32_0 = arith.constant 0 : i32
    %c0_i32_1 = arith.constant 0 : i32
    return %c0_i32, %c0_i32_0 : i32, i32
  }
  func.func @transform_6(%arg0: i32) -> (i32, i32) {
    %c0_i32 = arith.constant 0 : i32
    %c0_i32_0 = arith.constant 0 : i32
    %c0_i32_1 = arith.constant 0 : i32
    return %c0_i32, %c0_i32_0 : i32, i32
  }
  func.func @transform_7(%arg0: i32) -> (i32, i32) {
    %c0_i32 = arith.constant 0 : i32
    %c0_i32_0 = arith.constant 0 : i32
    %c0_i32_1 = arith.constant 0 : i32
    return %c0_i32, %c0_i32_0 : i32, i32
  }
  func.func @transform_8(%arg0: i32) -> (i32, i32) {
    %c0_i32 = arith.constant 0 : i32
    %c0_i32_0 = arith.constant 0 : i32
    %c0_i32_1 = arith.constant 0 : i32
    return %c0_i32, %c0_i32_0 : i32, i32
  }
  func.func @transform_9(%arg0: i32) -> (i32, i32) {
    %c0_i32 = arith.constant 0 : i32
    %c0_i32_0 = arith.constant 0 : i32
    return %c0_i32, %arg0 : i32, i32
  }
}

</mosaic_0001>

<llo_original>
// kernel: verifying_sd_forward.1
$region0: #{verifying_sd_forward.1}
  #allocation0 [shape = 'u32[]', space=smem, size = 0x4, offset = 0x4, fixed_abs, tag = 'smem constant byte address 0x4 - core index']
  #allocation1 [shape = 'u32[144,128]{1,0:T(1,128)}', space=vmem, size = 0x12000, scoped, tag = 'internal scratch']
  #allocation2 [shape = 'f32[1,1]{1,0:T(1,128)S(1)}', space=vmem, size = 0x200, scoped, tag = 'scoped memory for verifying_sd_forward.1']
  %s0 = inlined_call_operand.hbm [shape: f32[300,128], index: 0, kind: input, shape index: {}]
  %s1 = inlined_call_operand.hbm [shape: bf16[128,128], index: 1, kind: input, shape index: {}]
  %s2 = inlined_call_operand.vmem [shape: f32[1,128], index: 2, kind: input, shape index: {}]
  %s3 = inlined_call_operand.hbm [shape: bf16[128,128], index: 3, kind: input, shape index: {}]
  %s4 = inlined_call_operand.vmem [shape: f32[1,128], index: 4, kind: input, shape index: {}]
  %s5 = inlined_call_operand.hbm [shape: bf16[128,128], index: 5, kind: input, shape index: {}]
  %s6 = inlined_call_operand.vmem [shape: f32[1,128], index: 6, kind: input, shape index: {}]
  %s7 = inlined_call_operand.vmem [shape: bf16[16,128], index: 7, kind: input, shape index: {}]
  %s8 = inlined_call_operand.<no memory space> [shape: f32[1,1], index: 8, kind: input, shape index: {}]
  %s9 = inlined_call_operand.vmem [shape: f32[1,512], index: 9, kind: output, shape index: {}]
  %s10 = sld [smem:[#allocation0]]
  $region85: #{verifying_sd_forward.1} parent=0
    _
  %s12 = ssub.s32 1, %s10
  %s13 = scalar_select 0, %s12, %s10
  %v14 = vstv %s8
  %15 = vst [vmem:[#allocation2] sm:$0x1] %v14
  $region1: #{verifying_sd_forward.1} parent=0
    #allocation3 [shape = 'u8[262144]{0}', space=vmem, size = 0x40000, scoped, tag = 'input window, operand 0']
    #allocation4 [shape = 's32[2]{0}', space=sflag, size = 0x8, scoped, tag = 'scoped memory for verifying_sd_forward.1']
    #allocation5 [shape = 'u8[32768]{0}', space=vmem, size = 0x8000, scoped, tag = 'input window, operand 1, single buffered']
    #allocation6 [shape = 's32[1]{0}', space=sflag, size = 0x4, scoped, tag = 'scoped memory for verifying_sd_forward.1']
    #allocation7 [shape = 'u8[32768]{0}', space=vmem, size = 0x8000, scoped, tag = 'input window, operand 3, single buffered']
    #allocation8 [shape = 'u8[32768]{0}', space=vmem, size = 0x8000, scoped, tag = 'input window, operand 5, single buffered']
    #allocation9 [shape = 's32[1]{0}', space=sflag, size = 0x4, scoped, tag = 'scoped memory for verifying_sd_forward.1']
    %16 = vsyncpa [#allocation4], 0
    %s17 = scalar_lea.sflag [#allocation4], 1
    %18 = vsyncpa %s17, 0
    %19 = vsyncpa [#allocation6], 0
    %20 = vsyncpa [#allocation9], 0
    loop: start=0, step=1, limit=4
    $region2: #{verifying_sd_forward.1} parent=1 // loop_pre_header
      _
    $region3: #{verifying_sd_forward.1} parent=1 // loop_header
      %s22 = sphi 0, %s26
      %p23 = scmp.ge.s32.totalorder %s22, 4
      %s32 = sphi 0, %s34
      %s35 = sphi 0, %s32
      %s36 = sphi 0, %s35
      %s52 = sphi 0, %s36
      %s56 = sphi 0, %s56
      %s58 = sphi 0, %s56
      %s59 = sphi 0, %s58
      %s73 = sphi 0, %s59
      %s77 = sphi 0, %s77
      %s79 = sphi 0, %s77
      %s80 = sphi 0, %s79
      %s94 = sphi 0, %s80
      %s98 = sphi 0, %s98
      %s100 = sphi 0, %s98
      %s101 = sphi 0, %s100
      %s115 = sphi 0, %s101
      %s119 = sphi 0, %s119
      %s121 = sphi 0, %s119
      %s122 = sphi 0, %s121
      %s136 = sphi 0, %s122
      %s140 = sphi 0, %s140
      %s142 = sphi 0, %s140
      %s143 = sphi 0, %s142
      %s157 = sphi 0, %s143
      %s161 = sphi 0, %s161
      %s163 = sphi 0, %s161
      %s164 = sphi 0, %s163
      %s178 = sphi 0, %s164
      %s182 = sphi 0, %s182
      %s184 = sphi 0, %s182
      %s185 = sphi 0, %s184
      %s199 = sphi 0, %s185
      %s203 = sphi 0, %s203
      %s205 = sphi 0, %s203
      %s206 = sphi 0, %s205
      %s220 = sphi 0, %s206
      %s226 = sphi 0, %s228
      %s229 = sphi 0, %s226
      %s230 = sphi 0, %s229
      %s246 = sphi 0, %s230
    $region4: #{verifying_sd_forward.1} parent=1 // loop_header_branch
      %25 = sbr.rel (%p23) target = $region8
    $region5: #{verifying_sd_forward.1} parent=1 // loop_body
      %s27 = ssub.s32 %s22, 1
      %s28 = ssub.s32 %s22, 2
      %s29 = sadd.s32 %s22, 1
      %s30 = ssub.s32 %s22, %s29
      %p31 = scmp.eq.s32.totalorder %s30, 0
      %s33 = sadd.s32 %s32, 1
      %s34 = scalar_select %p31, %s32, %s33
      %p37 = pneg %p31
      %p38 = scmp.eq.s32.totalorder %s22, 1
      %p39 = por %p37, %p38
      %p40 = scmp.ne.s32.totalorder %s32, %s35
      %p41 = scmp.eq.s32.totalorder %s22, 0
      %p42 = por %p40, %p41
      %p43 = scmp.ne.s32.totalorder %s32, %s35
      %p44 = scmp.eq.s32.totalorder %s27, 1
      %p45 = por %p43, %p44
      %p46 = scmp.ne.s32.totalorder %s35, %s36
      %p47 = scmp.eq.s32.totalorder %s27, 0
      %p48 = por %p46, %p47
      %p49 = scmp.ne.s32.totalorder %s35, %s36
      %p50 = scmp.eq.s32.totalorder %s28, 1
      %p51 = por %p49, %p50
      %p53 = scmp.ne.s32.totalorder %s36, %s52
      %p54 = scmp.eq.s32.totalorder %s28, 0
      %p55 = por %p53, %p54
      %s57 = sadd.s32 %s56, 1
      %p60 = scmp.eq.s32.totalorder %s22, 1
      %p61 = scmp.ne.s32.totalorder %s56, %s58
      %p62 = scmp.eq.s32.totalorder %s22, 0
      %p63 = por %p61, %p62
      %p64 = scmp.ne.s32.totalorder %s56, %s58
      %p65 = scmp.eq.s32.totalorder %s27, 1
      %p66 = por %p64, %p65
      %p67 = scmp.ne.s32.totalorder %s58, %s59
      %p68 = scmp.eq.s32.totalorder %s27, 0
      %p69 = por %p67, %p68
      %p70 = scmp.ne.s32.totalorder %s58, %s59
      %p71 = scmp.eq.s32.totalorder %s28, 1
      %p72 = por %p70, %p71
      %p74 = scmp.ne.s32.totalorder %s59, %s73
      %p75 = scmp.eq.s32.totalorder %s28, 0
      %p76 = por %p74, %p75
      %s78 = sadd.s32 %s77, 1
      %p81 = scmp.eq.s32.totalorder %s22, 1
      %p82 = scmp.ne.s32.totalorder %s77, %s79
      %p83 = scmp.eq.s32.totalorder %s22, 0
      %p84 = por %p82, %p83
      %p85 = scmp.ne.s32.totalorder %s77, %s79
      %p86 = scmp.eq.s32.totalorder %s27, 1
      %p87 = por %p85, %p86
      %p88 = scmp.ne.s32.totalorder %s79, %s80
      %p89 = scmp.eq.s32.totalorder %s27, 0
      %p90 = por %p88, %p89
      %p91 = scmp.ne.s32.totalorder %s79, %s80
      %p92 = scmp.eq.s32.totalorder %s28, 1
      %p93 = por %p91, %p92
      %p95 = scmp.ne.s32.totalorder %s80, %s94
      %p96 = scmp.eq.s32.totalorder %s28, 0
      %p97 = por %p95, %p96
      %s99 = sadd.s32 %s98, 1
      %p102 = scmp.eq.s32.totalorder %s22, 1
      %p103 = scmp.ne.s32.totalorder %s98, %s100
      %p104 = scmp.eq.s32.totalorder %s22, 0
      %p105 = por %p103, %p104
      %p106 = scmp.ne.s32.totalorder %s98, %s100
      %p107 = scmp.eq.s32.totalorder %s27, 1
      %p108 = por %p106, %p107
      %p109 = scmp.ne.s32.totalorder %s100, %s101
      %p110 = scmp.eq.s32.totalorder %s27, 0
      %p111 = por %p109, %p110
      %p112 = scmp.ne.s32.totalorder %s100, %s101
      %p113 = scmp.eq.s32.totalorder %s28, 1
      %p114 = por %p112, %p113
      %p116 = scmp.ne.s32.totalorder %s101, %s115
      %p117 = scmp.eq.s32.totalorder %s28, 0
      %p118 = por %p116, %p117
      %s120 = sadd.s32 %s119, 1
      %p123 = scmp.eq.s32.totalorder %s22, 1
      %p124 = scmp.ne.s32.totalorder %s119, %s121
      %p125 = scmp.eq.s32.totalorder %s22, 0
      %p126 = por %p124, %p125
      %p127 = scmp.ne.s32.totalorder %s119, %s121
      %p128 = scmp.eq.s32.totalorder %s27, 1
      %p129 = por %p127, %p128
      %p130 = scmp.ne.s32.totalorder %s121, %s122
      %p131 = scmp.eq.s32.totalorder %s27, 0
      %p132 = por %p130, %p131
      %p133 = scmp.ne.s32.totalorder %s121, %s122
      %p134 = scmp.eq.s32.totalorder %s28, 1
      %p135 = por %p133, %p134
      %p137 = scmp.ne.s32.totalorder %s122, %s136
      %p138 = scmp.eq.s32.totalorder %s28, 0
      %p139 = por %p137, %p138
      %s141 = sadd.s32 %s140, 1
      %p144 = scmp.eq.s32.totalorder %s22, 1
      %p145 = scmp.ne.s32.totalorder %s140, %s142
      %p146 = scmp.eq.s32.totalorder %s22, 0
      %p147 = por %p145, %p146
      %p148 = scmp.ne.s32.totalorder %s140, %s142
      %p149 = scmp.eq.s32.totalorder %s27, 1
      %p150 = por %p148, %p149
      %p151 = scmp.ne.s32.totalorder %s142, %s143
      %p152 = scmp.eq.s32.totalorder %s27, 0
      %p153 = por %p151, %p152
      %p154 = scmp.ne.s32.totalorder %s142, %s143
      %p155 = scmp.eq.s32.totalorder %s28, 1
      %p156 = por %p154, %p155
      %p158 = scmp.ne.s32.totalorder %s143, %s157
      %p159 = scmp.eq.s32.totalorder %s28, 0
      %p160 = por %p158, %p159
      %s162 = sadd.s32 %s161, 1
      %p165 = scmp.eq.s32.totalorder %s22, 1
      %p166 = scmp.ne.s32.totalorder %s161, %s163
      %p167 = scmp.eq.s32.totalorder %s22, 0
      %p168 = por %p166, %p167
      %p169 = scmp.ne.s32.totalorder %s161, %s163
      %p170 = scmp.eq.s32.totalorder %s27, 1
      %p171 = por %p169, %p170
      %p172 = scmp.ne.s32.totalorder %s163, %s164
      %p173 = scmp.eq.s32.totalorder %s27, 0
      %p174 = por %p172, %p173
      %p175 = scmp.ne.s32.totalorder %s163, %s164
      %p176 = scmp.eq.s32.totalorder %s28, 1
      %p177 = por %p175, %p176
      %p179 = scmp.ne.s32.totalorder %s164, %s178
      %p180 = scmp.eq.s32.totalorder %s28, 0
      %p181 = por %p179, %p180
      %s183 = sadd.s32 %s182, 1
      %p186 = scmp.eq.s32.totalorder %s22, 1
      %p187 = scmp.ne.s32.totalorder %s182, %s184
      %p188 = scmp.eq.s32.totalorder %s22, 0
      %p189 = por %p187, %p188
      %p190 = scmp.ne.s32.totalorder %s182, %s184
      %p191 = scmp.eq.s32.totalorder %s27, 1
      %p192 = por %p190, %p191
      %p193 = scmp.ne.s32.totalorder %s184, %s185
      %p194 = scmp.eq.s32.totalorder %s27, 0
      %p195 = por %p193, %p194
      %p196 = scmp.ne.s32.totalorder %s184, %s185
      %p197 = scmp.eq.s32.totalorder %s28, 1
      %p198 = por %p196, %p197
      %p200 = scmp.ne.s32.totalorder %s185, %s199
      %p201 = scmp.eq.s32.totalorder %s28, 0
      %p202 = por %p200, %p201
      %s204 = sadd.s32 %s203, 1
      %p207 = scmp.eq.s32.totalorder %s22, 1
      %p208 = scmp.ne.s32.totalorder %s203, %s205
      %p209 = scmp.eq.s32.totalorder %s22, 0
      %p210 = por %p208, %p209
      %p211 = scmp.ne.s32.totalorder %s203, %s205
      %p212 = scmp.eq.s32.totalorder %s27, 1
      %p213 = por %p211, %p212
      %p214 = scmp.ne.s32.totalorder %s205, %s206
      %p215 = scmp.eq.s32.totalorder %s27, 0
      %p216 = por %p214, %p215
      %p217 = scmp.ne.s32.totalorder %s205, %s206
      %p218 = scmp.eq.s32.totalorder %s28, 1
      %p219 = por %p217, %p218
      %p221 = scmp.ne.s32.totalorder %s206, %s220
      %p222 = scmp.eq.s32.totalorder %s28, 0
      %p223 = por %p221, %p222
      %s224 = ssub.s32 %s22, %s29
      %p225 = scmp.eq.s32.totalorder %s224, 0
      %s227 = sadd.s32 %s226, 1
      %s228 = scalar_select %p225, %s226, %s227
      %p231 = pneg %p225
      %p232 = scmp.eq.s32.totalorder %s22, 1
      %p233 = por %p231, %p232
      %p234 = scmp.ne.s32.totalorder %s226, %s229
      %p235 = scmp.eq.s32.totalorder %s22, 0
      %p236 = por %p234, %p235
      %p237 = scmp.ne.s32.totalorder %s226, %s229
      %p238 = scmp.eq.s32.totalorder %s27, 1
      %p239 = por %p237, %p238
      %p240 = scmp.ne.s32.totalorder %s229, %s230
      %p241 = scmp.eq.s32.totalorder %s27, 0
      %p242 = por %p240, %p241
      %p243 = scmp.ne.s32.totalorder %s229, %s230
      %p244 = scmp.eq.s32.totalorder %s28, 1
      %p245 = por %p243, %p244
      %p247 = scmp.ne.s32.totalorder %s230, %s246
      %p248 = scmp.eq.s32.totalorder %s28, 0
      %p249 = por %p247, %p248
      %p250 = scmp.le.s32.totalorder 1, %s22
      %p251 = scmp.lt.s32.totalorder %s22, 3
      %p252 = pnand %p250, %p251
      %p253 = pneg %p252
      // Predicated region
      $region9: #{verifying_sd_forward.1} parent=5 // pred_check
        _
      $region10: #{verifying_sd_forward.1} parent=5 // pred_check_branch
        %255 = sbr.rel (%p252) target = $region12
      $region11: #{verifying_sd_forward.1} parent=5 // pred_region
        %s256 = ssub.s32 %s22, 1
        // Predicated region
        $region13: #{verifying_sd_forward.1} parent=11 // pred_check
          %p257 = pneg %p69
        $region14: #{verifying_sd_forward.1} parent=11 // pred_check_branch
          %259 = sbr.rel (%p257) target = $region16
        $region15: #{verifying_sd_forward.1} parent=11 // pred_region
          %s261 = ssub.s32 1024, 1024
          %262 = vsyncadd [#allocation6], %s261
          %s263 = sshll.u32 [#allocation5], 4
          %s264 = int_to_ptr.vmem [resolvable:$true] %s263
          %269 = dma.hbm_to_vmem [thread:$0]  %s1, 1024, %s264, [#allocation6], 64, 64, 4
        $region16: #{verifying_sd_forward.1} parent=11 // pred_fallthru
          _
        // Predicated region
        $region17: #{verifying_sd_forward.1} parent=11 // pred_check
          %p270 = pneg %p90
        $region18: #{verifying_sd_forward.1} parent=11 // pred_check_branch
          %272 = sbr.rel (%p270) target = $region20
        $region19: #{verifying_sd_forward.1} parent=11 // pred_region
          _
        $region20: #{verifying_sd_forward.1} parent=11 // pred_fallthru
          _
        // Predicated region
        $region21: #{verifying_sd_forward.1} parent=11 // pred_check
          %p273 = pneg %p111
        $region22: #{verifying_sd_forward.1} parent=11 // pred_check_branch
          %275 = sbr.rel (%p273) target = $region24
        $region23: #{verifying_sd_forward.1} parent=11 // pred_region
          %s277 = ssub.s32 1024, 1024
          %278 = vsyncadd [#allocation6], %s277
          %s279 = sshll.u32 [#allocation7], 4
          %s280 = int_to_ptr.vmem [resolvable:$true] %s279
          %285 = dma.hbm_to_vmem [thread:$0]  %s3, 1024, %s280, [#allocation6], 64, 64, 4
        $region24: #{verifying_sd_forward.1} parent=11 // pred_fallthru
          _
        // Predicated region
        $region25: #{verifying_sd_forward.1} parent=11 // pred_check
          %p286 = pneg %p132
        $region26: #{verifying_sd_forward.1} parent=11 // pred_check_branch
          %288 = sbr.rel (%p286) target = $region28
        $region27: #{verifying_sd_forward.1} parent=11 // pred_region
          _
        $region28: #{verifying_sd_forward.1} parent=11 // pred_fallthru
          _
        // Predicated region
        $region29: #{verifying_sd_forward.1} parent=11 // pred_check
          %p289 = pneg %p153
        $region30: #{verifying_sd_forward.1} parent=11 // pred_check_branch
          %291 = sbr.rel (%p289) target = $region32
        $region31: #{verifying_sd_forward.1} parent=11 // pred_region
          %s293 = ssub.s32 1024, 1024
          %294 = vsyncadd [#allocation9], %s293
          %s295 = sshll.u32 [#allocation8], 4
          %s296 = int_to_ptr.vmem [resolvable:$true] %s295
          %301 = dma.hbm_to_vmem [thread:$0]  %s5, 1024, %s296, [#allocation9], 64, 64, 4
        $region32: #{verifying_sd_forward.1} parent=11 // pred_fallthru
          _
        // Predicated region
        $region33: #{verifying_sd_forward.1} parent=11 // pred_check
          %p302 = pneg %p174
        $region34: #{verifying_sd_forward.1} parent=11 // pred_check_branch
          %304 = sbr.rel (%p302) target = $region36
        $region35: #{verifying_sd_forward.1} parent=11 // pred_region
          _
        $region36: #{verifying_sd_forward.1} parent=11 // pred_fallthru
          _
        // Predicated region
        $region37: #{verifying_sd_forward.1} parent=11 // pred_check
          %p305 = pneg %p195
        $region38: #{verifying_sd_forward.1} parent=11 // pred_check_branch
          %307 = sbr.rel (%p305) target = $region40
        $region39: #{verifying_sd_forward.1} parent=11 // pred_region
          _
        $region40: #{verifying_sd_forward.1} parent=11 // pred_fallthru
          _
        // Predicated region
        $region41: #{verifying_sd_forward.1} parent=11 // pred_check
          %p308 = pneg %p216
        $region42: #{verifying_sd_forward.1} parent=11 // pred_check_branch
          %310 = sbr.rel (%p308) target = $region44
        $region43: #{verifying_sd_forward.1} parent=11 // pred_region
          _
        $region44: #{verifying_sd_forward.1} parent=11 // pred_fallthru
          _
      $region12: #{verifying_sd_forward.1} parent=5 // pred_fallthru
        _
      %p311 = scmp.lt.s32.totalorder %s22, 2
      // Predicated region
      $region45: #{verifying_sd_forward.1} parent=5 // pred_check
        %p312 = pneg %p311
      $region46: #{verifying_sd_forward.1} parent=5 // pred_check_branch
        %314 = sbr.rel (%p312) target = $region48
      $region47: #{verifying_sd_forward.1} parent=5 // pred_region
        // Predicated region
        $region49: #{verifying_sd_forward.1} parent=47 // pred_check
          %p315 = pneg %p42
        $region50: #{verifying_sd_forward.1} parent=47 // pred_check_branch
          %317 = sbr.rel (%p315) target = $region52
        $region51: #{verifying_sd_forward.1} parent=47 // pred_region
          %s318 = sand.u32 %s32, 1
          %s319 = scalar_lea.sflag [#allocation4], %s318
          %s320 = sand.u32 %s32, 1
          %s321 = smul.addr %s320, 256
          %s322 = scalar_lea.vmem [#allocation3], %s321
          %s323 = smul.u32 32, %s22
          %s324 = ssub.s32 38, %s323
          %p325 = scmp.lt.s32.totalorder %s324, 32
          %s326 = scalar_select %p325, %s324, 32
          %s327 = smul.u32 128, %s326
          %s329 = ssub.s32 4096, %s327
          %330 = vsyncadd %s319, %s329
          %p331 = scmp.ne.s32.totalorder 0, %s327
          %s332 = smul.addr %s323, 128
          %s333 = scalar_lea.hbm %s0, %s332
          %s334 = smul.u32 8, %s326
          %s335 = sshll.u32 %s322, 4
          %s336 = int_to_ptr.vmem [resolvable:$true] %s335
          %s337 = sshll.u32 %s334, 4
          %341 = dma.hbm_to_vmem [thread:$0]  (%p331), %s333, %s337, %s336, %s319, 128, 128, 8
        $region52: #{verifying_sd_forward.1} parent=47 // pred_fallthru
          _
      $region48: #{verifying_sd_forward.1} parent=5 // pred_fallthru
        _
      %p342 = scmp.le.s32.totalorder 1, %s22
      %p343 = scmp.lt.s32.totalorder %s22, 3
      %p344 = pnand %p342, %p343
      %p345 = pneg %p344
      // Predicated region
      $region53: #{verifying_sd_forward.1} parent=5 // pred_check
        _
      $region54: #{verifying_sd_forward.1} parent=5 // pred_check_branch
        %347 = sbr.rel (%p344) target = $region56
      $region55: #{verifying_sd_forward.1} parent=5 // pred_region
        %s348 = ssub.s32 %s22, 1
        %s349 = sand.u32 %s35, 1
        %s350 = scalar_lea.sflag [#allocation4], %s349
        %s351 = sand.u32 %s35, 1
        %s352 = smul.addr %s351, 256
        %s353 = scalar_lea.vmem [#allocation3], %s352
        // Predicated region
        $region57: #{verifying_sd_forward.1} parent=55 // pred_check
          %p354 = pneg %p48
        $region58: #{verifying_sd_forward.1} parent=55 // pred_check_branch
          %356 = sbr.rel (%p354) target = $region60
        $region59: #{verifying_sd_forward.1} parent=55 // pred_region
          %357 = dma.done %s350, 4096
        $region60: #{verifying_sd_forward.1} parent=55 // pred_fallthru
          _
        // Predicated region
        $region61: #{verifying_sd_forward.1} parent=55 // pred_check
          %p358 = pneg %p69
        $region62: #{verifying_sd_forward.1} parent=55 // pred_check_branch
          %360 = sbr.rel (%p358) target = $region64
        $region63: #{verifying_sd_forward.1} parent=55 // pred_region
          %361 = dma.done [#allocation6], 1024
        $region64: #{verifying_sd_forward.1} parent=55 // pred_fallthru
          _
        // Predicated region
        $region65: #{verifying_sd_forward.1} parent=55 // pred_check
          %p362 = pneg %p111
        $region66: #{verifying_sd_forward.1} parent=55 // pred_check_branch
          %364 = sbr.rel (%p362) target = $region68
        $region67: #{verifying_sd_forward.1} parent=55 // pred_region
          %365 = dma.done [#allocation6], 1024
        $region68: #{verifying_sd_forward.1} parent=55 // pred_fallthru
          _
        // Predicated region
        $region69: #{verifying_sd_forward.1} parent=55 // pred_check
          %p366 = pneg %p153
        $region70: #{verifying_sd_forward.1} parent=55 // pred_check_branch
          %368 = sbr.rel (%p366) target = $region72
        $region71: #{verifying_sd_forward.1} parent=55 // pred_region
          %369 = dma.done [#allocation9], 1024
        $region72: #{verifying_sd_forward.1} parent=55 // pred_fallthru
          _
        %s370 = sand.u32 %s35, 1
        %s371 = scalar_lea.sflag [#allocation4], %s370
        %s372 = sand.u32 %s35, 1
        %s373 = smul.addr %s372, 256
        %s374 = scalar_lea.vmem [#allocation3], %s373
        %p375 = pneg %p48
        %p376 = pneg %p45
        %p377 = pneg %p69
        %p378 = pneg %p66
        %p379 = pneg %p90
        %p380 = pneg %p87
        %p381 = pneg %p111
        %p382 = pneg %p108
        %p383 = pneg %p132
        %p384 = pneg %p129
        %p385 = pneg %p153
        %p386 = pneg %p150
        %p387 = pneg %p174
        %p388 = pneg %p171
        %p389 = pneg %p195
        %p390 = pneg %p192
        %p391 = pneg %p216
        %p392 = pneg %p213
        %p393 = pneg %p242
        %p394 = pneg %p239
        %s395 = smul.u32 2, %s27
        %p396 = scmp.lt.s32.totalorder %s395, 3
        %s397 = scalar_select %p396, %s395, 3
        %s398 = scalar_lea.vmem %s9, %s397
        %s399 = smul.u32 32, %s27
        %s400 = ssub.s32 38, %s399
        %p401 = scmp.lt.s32.totalorder %s400, 32
        %s402 = scalar_select %p401, %s400, 32
        %s403 = smul.u32 128, %s402
        %s404 = smul.u32 2, %s27
        %p405 = scmp.lt.s32.totalorder %s404, 3
        %s406 = scalar_select %p405, %s404, 3
        %s407 = scalar_lea.vmem %s9, %s406
        %s408 = smul.u32 2, %s27
        %v410 = vld [vmem:[%s353] sm:$0xff]
        %v411 = vld [vmem:[%s353 + $0x8] sm:$0xff]
        %v412 = vld [vmem:[%s353 + $0x10] sm:$0xff]
        %v413 = vld [vmem:[%s353 + $0x18] sm:$0xff]
        %v414 = vld [vmem:[%s353 + $0x20] sm:$0xff]
        %v415 = vld [vmem:[%s353 + $0x28] sm:$0xff]
        %v416 = vld [vmem:[%s353 + $0x30] sm:$0xff]
        %v417 = vld [vmem:[%s353 + $0x38] sm:$0xff]
        %v418 = vld [vmem:[%s353 + $0x40] sm:$0xff]
        %v419 = vld [vmem:[%s353 + $0x48] sm:$0xff]
        %v420 = vld [vmem:[%s353 + $0x50] sm:$0xff]
        %v421 = vld [vmem:[%s353 + $0x58] sm:$0xff]
        %v422 = vld [vmem:[%s353 + $0x60] sm:$0xff]
        %v423 = vld [vmem:[%s353 + $0x68] sm:$0xff]
        %v424 = vld [vmem:[%s353 + $0x70] sm:$0xff]
        %v425 = vld [vmem:[%s353 + $0x78] sm:$0xff]
        %v426 = vld [vmem:[%s353 + $0x80] sm:$0xff]
        %v427 = vld [vmem:[%s353 + $0x88] sm:$0xff]
        %v428 = vld [vmem:[%s353 + $0x90] sm:$0xff]
        %v429 = vld [vmem:[%s353 + $0x98] sm:$0xff]
        %v430 = vld [vmem:[%s353 + $0xa0] sm:$0xff]
        %v431 = vld [vmem:[%s353 + $0xa8] sm:$0xff]
        %v432 = vld [vmem:[%s353 + $0xb0] sm:$0xff]
        %v433 = vld [vmem:[%s353 + $0xb8] sm:$0xff]
        %v434 = vld [vmem:[%s353 + $0xc0] sm:$0xff]
        %v435 = vld [vmem:[%s353 + $0xc8] sm:$0xff]
        %v436 = vld [vmem:[%s353 + $0xd0] sm:$0xff]
        %v437 = vld [vmem:[%s353 + $0xd8] sm:$0xff]
        %v438 = vld [vmem:[%s353 + $0xe0] sm:$0xff]
        %v439 = vld [vmem:[%s353 + $0xe8] sm:$0xff]
        %v440 = vld [vmem:[%s353 + $0xf0] sm:$0xff]
        %v441 = vld [vmem:[%s353 + $0xf8] sm:$0xff]
        %v442 = vpack.c.bf16 %v411, %v410
        %v443 = vpack.c.bf16 %v413, %v412
        %v444 = vpack.c.bf16 %v415, %v414
        %v445 = vpack.c.bf16 %v417, %v416
        %v446 = vpack.c.bf16 %v419, %v418
        %v447 = vpack.c.bf16 %v421, %v420
        %v448 = vpack.c.bf16 %v423, %v422
        %v449 = vpack.c.bf16 %v425, %v424
        %v450 = vpack.c.bf16 %v427, %v426
        %v451 = vpack.c.bf16 %v429, %v428
        %v452 = vpack.c.bf16 %v431, %v430
        %v453 = vpack.c.bf16 %v433, %v432
        %v454 = vpack.c.bf16 %v435, %v434
        %v455 = vpack.c.bf16 %v437, %v436
        %v456 = vpack.c.bf16 %v439, %v438
        %v457 = vpack.c.bf16 %v441, %v440
        %v458 = vld [vmem:[#allocation5] sm:$0xf]
        %v459 = vld [vmem:[#allocation5 + $0x4] sm:$0xf]
        %v460 = vld [vmem:[#allocation5 + $0x8] sm:$0xf]
        %v461 = vld [vmem:[#allocation5 + $0xc] sm:$0xf]
        %v462 = vld [vmem:[#allocation5 + $0x10] sm:$0xf]
        %v463 = vld [vmem:[#allocation5 + $0x14] sm:$0xf]
        %v464 = vld [vmem:[#allocation5 + $0x18] sm:$0xf]
        %v465 = vld [vmem:[#allocation5 + $0x1c] sm:$0xf]
        %v466 = vld [vmem:[#allocation5 + $0x20] sm:$0xf]
        %v467 = vld [vmem:[#allocation5 + $0x24] sm:$0xf]
        %v468 = vld [vmem:[#allocation5 + $0x28] sm:$0xf]
        %v469 = vld [vmem:[#allocation5 + $0x2c] sm:$0xf]
        %v470 = vld [vmem:[#allocation5 + $0x30] sm:$0xf]
        %v471 = vld [vmem:[#allocation5 + $0x34] sm:$0xf]
        %v472 = vld [vmem:[#allocation5 + $0x38] sm:$0xf]
        %v473 = vld [vmem:[#allocation5 + $0x3c] sm:$0xf]
        %v474 = vld [vmem:[%s2] sm:$0x1]
        %v476 = vlaneseq
        %v477 = vshrl.u32 %v476, 7
        %v478 = vsub.s32 0, %v477
        %v479 = vrot.slane %v474, %v478
        %v497 = vunpack.c.l.b16 %v458
        %v498 = vunpack.c.l.b16 %v459
        %v499 = vunpack.c.l.b16 %v460
        %v500 = vunpack.c.l.b16 %v461
        %v501 = vunpack.c.l.b16 %v462
        %v502 = vunpack.c.l.b16 %v463
        %v503 = vunpack.c.l.b16 %v464
        %v504 = vunpack.c.l.b16 %v465
        %v505 = vunpack.c.l.b16 %v466
        %v506 = vunpack.c.l.b16 %v467
        %v507 = vunpack.c.l.b16 %v468
        %v508 = vunpack.c.l.b16 %v469
        %v509 = vunpack.c.l.b16 %v470
        %v510 = vunpack.c.l.b16 %v471
        %v511 = vunpack.c.l.b16 %v472
        %v512 = vunpack.c.l.b16 %v473
        %v513 = vpack.c.b16 %v498, %v497
        %v514 = vpack.c.b16 %v500, %v499
        %v515 = vpack.c.b16 %v502, %v501
        %v516 = vpack.c.b16 %v504, %v503
        %v517 = vpack.c.b16 %v506, %v505
        %v518 = vpack.c.b16 %v508, %v507
        %v519 = vpack.c.b16 %v510, %v509
        %v520 = vpack.c.b16 %v512, %v511
        %529 = vmatprep.subr.bf16.mxu0 0
        %530 = vmatpush1.bf16.msra.mxu0 %v520
        %531 = vmatprep.subr.bf16.mxu0 0
        %532 = vmatpush1.bf16.msra.mxu0 %v519
        %533 = vmatprep.subr.bf16.mxu0 0
        %534 = vmatpush1.bf16.msra.mxu0 %v518
        %535 = vmatprep.subr.bf16.mxu0 0
        %536 = vmatpush1.bf16.msra.mxu0 %v517
        %537 = vmatprep.subr.bf16.mxu0 0
        %538 = vmatpush1.bf16.msra.mxu0 %v516
        %539 = vmatprep.subr.bf16.mxu0 0
        %540 = vmatpush1.bf16.msra.mxu0 %v515
        %541 = vmatprep.subr.bf16.mxu0 0
        %542 = vmatpush1.bf16.msra.mxu0 %v514
        %543 = vmatprep.subr.bf16.mxu0 0
        %544 = vmatpush1.bf16.msra.mxu0 %v513
        %545 = vmatprep.subr.bf16.mxu0 0
        %546 = vmatpush2.bf16.msra.mxu0 0
        %547 = vmatprep.subr.bf16.mxu0 0
        %548 = vmatpush2.bf16.msra.mxu0 0
        %549 = vmatprep.subr.bf16.mxu0 0
        %550 = vmatpush2.bf16.msra.mxu0 0
        %551 = vmatprep.subr.bf16.mxu0 0
        %552 = vmatpush2.bf16.msra.mxu0 0
        %553 = vmatprep.subr.bf16.mxu0 0
        %554 = vmatpush2.bf16.msra.mxu0 0
        %555 = vmatprep.subr.bf16.mxu0 0
        %556 = vmatpush2.bf16.msra.mxu0 0
        %557 = vmatprep.subr.bf16.mxu0 0
        %558 = vmatpush2.bf16.msra.mxu0 0
        %559 = vmatprep.subr.bf16.mxu0 0
        %560 = vmatpush2.bf16.msra.mxu0 0
        %561 = vmatprep.mubr.bf16.mxu0 0
        %562 = vmatmul.mubr.bf16.gmra.mxu0 %v442
        %v563 = vpop.f32.mrf.mxu0
        %v564 = vadd.f32 %v479, %v563
        %v565 = vpop.f32.mrf.mxu0
        %v566 = vpop.f32.mrf.mxu0
        %v567 = vadd.f32 %v479, %v566
        %v568 = vpop.f32.mrf.mxu0
        %569 = vmatprep.mubr.bf16.mxu0 0
        %570 = vmatmul.mubr.bf16.gmra.mxu0 %v443
        %v571 = vpop.f32.mrf.mxu0
        %v572 = vadd.f32 %v479, %v571
        %v573 = vpop.f32.mrf.mxu0
        %v574 = vpop.f32.mrf.mxu0
        %v575 = vadd.f32 %v479, %v574
        %v576 = vpop.f32.mrf.mxu0
        %577 = vmatprep.mubr.bf16.mxu0 0
        %578 = vmatmul.mubr.bf16.gmra.mxu0 %v444
        %v579 = vpop.f32.mrf.mxu0
        %v580 = vadd.f32 %v479, %v579
        %v581 = vpop.f32.mrf.mxu0
        %v582 = vpop.f32.mrf.mxu0
        %v583 = vadd.f32 %v479, %v582
        %v584 = vpop.f32.mrf.mxu0
        %585 = vmatprep.mubr.bf16.mxu0 0
        %586 = vmatmul.mubr.bf16.gmra.mxu0 %v445
        %v587 = vpop.f32.mrf.mxu0
        %v588 = vadd.f32 %v479, %v587
        %v589 = vpop.f32.mrf.mxu0
        %v590 = vpop.f32.mrf.mxu0
        %v591 = vadd.f32 %v479, %v590
        %v592 = vpop.f32.mrf.mxu0
        %593 = vmatprep.mubr.bf16.mxu0 0
        %594 = vmatmul.mubr.bf16.gmra.mxu0 %v446
        %v595 = vpop.f32.mrf.mxu0
        %v596 = vadd.f32 %v479, %v595
        %v597 = vpop.f32.mrf.mxu0
        %v598 = vpop.f32.mrf.mxu0
        %v599 = vadd.f32 %v479, %v598
        %v600 = vpop.f32.mrf.mxu0
        %601 = vmatprep.mubr.bf16.mxu0 0
        %602 = vmatmul.mubr.bf16.gmra.mxu0 %v447
        %v603 = vpop.f32.mrf.mxu0
        %v604 = vadd.f32 %v479, %v603
        %v605 = vpop.f32.mrf.mxu0
        %v606 = vpop.f32.mrf.mxu0
        %v607 = vadd.f32 %v479, %v606
        %v608 = vpop.f32.mrf.mxu0
        %609 = vmatprep.mubr.bf16.mxu0 0
        %610 = vmatmul.mubr.bf16.gmra.mxu0 %v448
        %v611 = vpop.f32.mrf.mxu0
        %v612 = vadd.f32 %v479, %v611
        %v613 = vpop.f32.mrf.mxu0
        %v614 = vpop.f32.mrf.mxu0
        %v615 = vadd.f32 %v479, %v614
        %v616 = vpop.f32.mrf.mxu0
        %617 = vmatprep.mubr.bf16.mxu0 0
        %618 = vmatmul.mubr.bf16.gmra.mxu0 %v449
        %v619 = vpop.f32.mrf.mxu0
        %v620 = vadd.f32 %v479, %v619
        %v621 = vpop.f32.mrf.mxu0
        %v622 = vpop.f32.mrf.mxu0
        %v623 = vadd.f32 %v479, %v622
        %v624 = vpop.f32.mrf.mxu0
        %625 = vmatprep.mubr.bf16.mxu0 0
        %626 = vmatmul.mubr.bf16.gmra.mxu0 %v450
        %v627 = vpop.f32.mrf.mxu0
        %v628 = vadd.f32 %v479, %v627
        %v629 = vpop.f32.mrf.mxu0
        %v630 = vpop.f32.mrf.mxu0
        %v631 = vadd.f32 %v479, %v630
        %v632 = vpop.f32.mrf.mxu0
        %633 = vmatprep.mubr.bf16.mxu0 0
        %634 = vmatmul.mubr.bf16.gmra.mxu0 %v451
        %v635 = vpop.f32.mrf.mxu0
        %v636 = vadd.f32 %v479, %v635
        %v637 = vpop.f32.mrf.mxu0
        %v638 = vpop.f32.mrf.mxu0
        %v639 = vadd.f32 %v479, %v638
        %v640 = vpop.f32.mrf.mxu0
        %641 = vmatprep.mubr.bf16.mxu0 0
        %642 = vmatmul.mubr.bf16.gmra.mxu0 %v452
        %v643 = vpop.f32.mrf.mxu0
        %v644 = vadd.f32 %v479, %v643
        %v645 = vpop.f32.mrf.mxu0
        %v646 = vpop.f32.mrf.mxu0
        %v647 = vadd.f32 %v479, %v646
        %v648 = vpop.f32.mrf.mxu0
        %649 = vmatprep.mubr.bf16.mxu0 0
        %650 = vmatmul.mubr.bf16.gmra.mxu0 %v453
        %v651 = vpop.f32.mrf.mxu0
        %v652 = vadd.f32 %v479, %v651
        %v653 = vpop.f32.mrf.mxu0
        %v654 = vpop.f32.mrf.mxu0
        %v655 = vadd.f32 %v479, %v654
        %v656 = vpop.f32.mrf.mxu0
        %657 = vmatprep.mubr.bf16.mxu0 0
        %658 = vmatmul.mubr.bf16.gmra.mxu0 %v454
        %v659 = vpop.f32.mrf.mxu0
        %v660 = vadd.f32 %v479, %v659
        %v661 = vpop.f32.mrf.mxu0
        %v662 = vpop.f32.mrf.mxu0
        %v663 = vadd.f32 %v479, %v662
        %v664 = vpop.f32.mrf.mxu0
        %665 = vmatprep.mubr.bf16.mxu0 0
        %666 = vmatmul.mubr.bf16.gmra.mxu0 %v455
        %v667 = vpop.f32.mrf.mxu0
        %v668 = vadd.f32 %v479, %v667
        %v669 = vpop.f32.mrf.mxu0
        %v670 = vpop.f32.mrf.mxu0
        %v671 = vadd.f32 %v479, %v670
        %v672 = vpop.f32.mrf.mxu0
        %673 = vmatprep.mubr.bf16.mxu0 0
        %674 = vmatmul.mubr.bf16.gmra.mxu0 %v456
        %v675 = vpop.f32.mrf.mxu0
        %v676 = vadd.f32 %v479, %v675
        %v677 = vpop.f32.mrf.mxu0
        %v678 = vpop.f32.mrf.mxu0
        %v679 = vadd.f32 %v479, %v678
        %v680 = vpop.f32.mrf.mxu0
        %681 = vmatprep.mubr.bf16.mxu0 0
        %682 = vmatmul.mubr.bf16.gmra.mxu0 %v457
        %v683 = vpop.f32.mrf.mxu0
        %v684 = vadd.f32 %v479, %v683
        %v685 = vpop.f32.mrf.mxu0
        %v686 = vpop.f32.mrf.mxu0
        %v687 = vadd.f32 %v479, %v686
        %v688 = vpop.f32.mrf.mxu0
        %689 = vdwg.mxu0
        %vm690 = vcmp.gt.f32.partialorder %v564, 0.0
        %vm691 = vcmp.gt.f32.partialorder %v567, 0.0
        %vm692 = vcmp.gt.f32.partialorder %v572, 0.0
        %vm693 = vcmp.gt.f32.partialorder %v575, 0.0
        %vm694 = vcmp.gt.f32.partialorder %v580, 0.0
        %vm695 = vcmp.gt.f32.partialorder %v583, 0.0
        %vm696 = vcmp.gt.f32.partialorder %v588, 0.0
        %vm697 = vcmp.gt.f32.partialorder %v591, 0.0
        %vm698 = vcmp.gt.f32.partialorder %v596, 0.0
        %vm699 = vcmp.gt.f32.partialorder %v599, 0.0
        %vm700 = vcmp.gt.f32.partialorder %v604, 0.0
        %vm701 = vcmp.gt.f32.partialorder %v607, 0.0
        %vm702 = vcmp.gt.f32.partialorder %v612, 0.0
        %vm703 = vcmp.gt.f32.partialorder %v615, 0.0
        %vm704 = vcmp.gt.f32.partialorder %v620, 0.0
        %vm705 = vcmp.gt.f32.partialorder %v623, 0.0
        %vm706 = vcmp.gt.f32.partialorder %v628, 0.0
        %vm707 = vcmp.gt.f32.partialorder %v631, 0.0
        %vm708 = vcmp.gt.f32.partialorder %v636, 0.0
        %vm709 = vcmp.gt.f32.partialorder %v639, 0.0
        %vm710 = vcmp.gt.f32.partialorder %v644, 0.0
        %vm711 = vcmp.gt.f32.partialorder %v647, 0.0
        %vm712 = vcmp.gt.f32.partialorder %v652, 0.0
        %vm713 = vcmp.gt.f32.partialorder %v655, 0.0
        %vm714 = vcmp.gt.f32.partialorder %v660, 0.0
        %vm715 = vcmp.gt.f32.partialorder %v663, 0.0
        %vm716 = vcmp.gt.f32.partialorder %v668, 0.0
        %vm717 = vcmp.gt.f32.partialorder %v671, 0.0
        %vm718 = vcmp.gt.f32.partialorder %v676, 0.0
        %vm719 = vcmp.gt.f32.partialorder %v679, 0.0
        %vm720 = vcmp.gt.f32.partialorder %v684, 0.0
        %vm721 = vcmp.gt.f32.partialorder %v687, 0.0
        %v722 = vmul.f32 %v564, 0.01
        %v723 = vmul.f32 %v567, 0.01
        %v724 = vmul.f32 %v572, 0.01
        %v725 = vmul.f32 %v575, 0.01
        %v726 = vmul.f32 %v580, 0.01
        %v727 = vmul.f32 %v583, 0.01
        %v728 = vmul.f32 %v588, 0.01
        %v729 = vmul.f32 %v591, 0.01
        %v730 = vmul.f32 %v596, 0.01
        %v731 = vmul.f32 %v599, 0.01
        %v732 = vmul.f32 %v604, 0.01
        %v733 = vmul.f32 %v607, 0.01
        %v734 = vmul.f32 %v612, 0.01
        %v735 = vmul.f32 %v615, 0.01
        %v736 = vmul.f32 %v620, 0.01
        %v737 = vmul.f32 %v623, 0.01
        %v738 = vmul.f32 %v628, 0.01
        %v739 = vmul.f32 %v631, 0.01
        %v740 = vmul.f32 %v636, 0.01
        %v741 = vmul.f32 %v639, 0.01
        %v742 = vmul.f32 %v644, 0.01
        %v743 = vmul.f32 %v647, 0.01
        %v744 = vmul.f32 %v652, 0.01
        %v745 = vmul.f32 %v655, 0.01
        %v746 = vmul.f32 %v660, 0.01
        %v747 = vmul.f32 %v663, 0.01
        %v748 = vmul.f32 %v668, 0.01
        %v749 = vmul.f32 %v671, 0.01
        %v750 = vmul.f32 %v676, 0.01
        %v751 = vmul.f32 %v679, 0.01
        %v752 = vmul.f32 %v684, 0.01
        %v753 = vmul.f32 %v687, 0.01
        %v754 = vsel %vm690, %v564, %v722
        %v755 = vsel %vm691, %v567, %v723
        %v756 = vsel %vm692, %v572, %v724
        %v757 = vsel %vm693, %v575, %v725
        %v758 = vsel %vm694, %v580, %v726
        %v759 = vsel %vm695, %v583, %v727
        %v760 = vsel %vm696, %v588, %v728
        %v761 = vsel %vm697, %v591, %v729
        %v762 = vsel %vm698, %v596, %v730
        %v763 = vsel %vm699, %v599, %v731
        %v764 = vsel %vm700, %v604, %v732
        %v765 = vsel %vm701, %v607, %v733
        %v766 = vsel %vm702, %v612, %v734
        %v767 = vsel %vm703, %v615, %v735
        %v768 = vsel %vm704, %v620, %v736
        %v769 = vsel %vm705, %v623, %v737
        %v770 = vsel %vm706, %v628, %v738
        %v771 = vsel %vm707, %v631, %v739
        %v772 = vsel %vm708, %v636, %v740
        %v773 = vsel %vm709, %v639, %v741
        %v774 = vsel %vm710, %v644, %v742
        %v775 = vsel %vm711, %v647, %v743
        %v776 = vsel %vm712, %v652, %v744
        %v777 = vsel %vm713, %v655, %v745
        %v778 = vsel %vm714, %v660, %v746
        %v779 = vsel %vm715, %v663, %v747
        %v780 = vsel %vm716, %v668, %v748
        %v781 = vsel %vm717, %v671, %v749
        %v782 = vsel %vm718, %v676, %v750
        %v783 = vsel %vm719, %v679, %v751
        %v784 = vsel %vm720, %v684, %v752
        %v785 = vsel %vm721, %v687, %v753
        %v786 = vpack.c.bf16 %v755, %v754
        %v787 = vpack.c.bf16 %v757, %v756
        %v788 = vpack.c.bf16 %v759, %v758
        %v789 = vpack.c.bf16 %v761, %v760
        %v790 = vpack.c.bf16 %v763, %v762
        %v791 = vpack.c.bf16 %v765, %v764
        %v792 = vpack.c.bf16 %v767, %v766
        %v793 = vpack.c.bf16 %v769, %v768
        %v794 = vpack.c.bf16 %v771, %v770
        %v795 = vpack.c.bf16 %v773, %v772
        %v796 = vpack.c.bf16 %v775, %v774
        %v797 = vpack.c.bf16 %v777, %v776
        %v798 = vpack.c.bf16 %v779, %v778
        %v799 = vpack.c.bf16 %v781, %v780
        %v800 = vpack.c.bf16 %v783, %v782
        %v801 = vpack.c.bf16 %v785, %v784
        %v802 = vld [vmem:[#allocation7] sm:$0xf]
        %v803 = vld [vmem:[#allocation7 + $0x4] sm:$0xf]
        %v804 = vld [vmem:[#allocation7 + $0x8] sm:$0xf]
        %v805 = vld [vmem:[#allocation7 + $0xc] sm:$0xf]
        %v806 = vld [vmem:[#allocation7 + $0x10] sm:$0xf]
        %v807 = vld [vmem:[#allocation7 + $0x14] sm:$0xf]
        %v808 = vld [vmem:[#allocation7 + $0x18] sm:$0xf]
        %v809 = vld [vmem:[#allocation7 + $0x1c] sm:$0xf]
        %v810 = vld [vmem:[#allocation7 + $0x20] sm:$0xf]
        %v811 = vld [vmem:[#allocation7 + $0x24] sm:$0xf]
        %v812 = vld [vmem:[#allocation7 + $0x28] sm:$0xf]
        %v813 = vld [vmem:[#allocation7 + $0x2c] sm:$0xf]
        %v814 = vld [vmem:[#allocation7 + $0x30] sm:$0xf]
        %v815 = vld [vmem:[#allocation7 + $0x34] sm:$0xf]
        %v816 = vld [vmem:[#allocation7 + $0x38] sm:$0xf]
        %v817 = vld [vmem:[#allocation7 + $0x3c] sm:$0xf]
        %v818 = vld [vmem:[%s4] sm:$0x1]
        %v820 = vlaneseq
        %v821 = vshrl.u32 %v820, 7
        %v822 = vsub.s32 0, %v821
        %v823 = vrot.slane %v818, %v822
        %v841 = vunpack.c.l.b16 %v802
        %v842 = vunpack.c.l.b16 %v803
        %v843 = vunpack.c.l.b16 %v804
        %v844 = vunpack.c.l.b16 %v805
        %v845 = vunpack.c.l.b16 %v806
        %v846 = vunpack.c.l.b16 %v807
        %v847 = vunpack.c.l.b16 %v808
        %v848 = vunpack.c.l.b16 %v809
        %v849 = vunpack.c.l.b16 %v810
        %v850 = vunpack.c.l.b16 %v811
        %v851 = vunpack.c.l.b16 %v812
        %v852 = vunpack.c.l.b16 %v813
        %v853 = vunpack.c.l.b16 %v814
        %v854 = vunpack.c.l.b16 %v815
        %v855 = vunpack.c.l.b16 %v816
        %v856 = vunpack.c.l.b16 %v817
        %v857 = vpack.c.b16 %v842, %v841
        %v858 = vpack.c.b16 %v844, %v843
        %v859 = vpack.c.b16 %v846, %v845
        %v860 = vpack.c.b16 %v848, %v847
        %v861 = vpack.c.b16 %v850, %v849
        %v862 = vpack.c.b16 %v852, %v851
        %v863 = vpack.c.b16 %v854, %v853
        %v864 = vpack.c.b16 %v856, %v855
        %873 = vmatprep.subr.bf16.mxu0 0
        %874 = vmatpush1.bf16.msra.mxu0 %v864
        %875 = vmatprep.subr.bf16.mxu0 0
        %876 = vmatpush1.bf16.msra.mxu0 %v863
        %877 = vmatprep.subr.bf16.mxu0 0
        %878 = vmatpush1.bf16.msra.mxu0 %v862
        %879 = vmatprep.subr.bf16.mxu0 0
        %880 = vmatpush1.bf16.msra.mxu0 %v861
        %881 = vmatprep.subr.bf16.mxu0 0
        %882 = vmatpush1.bf16.msra.mxu0 %v860
        %883 = vmatprep.subr.bf16.mxu0 0
        %884 = vmatpush1.bf16.msra.mxu0 %v859
        %885 = vmatprep.subr.bf16.mxu0 0
        %886 = vmatpush1.bf16.msra.mxu0 %v858
        %887 = vmatprep.subr.bf16.mxu0 0
        %888 = vmatpush1.bf16.msra.mxu0 %v857
        %889 = vmatprep.subr.bf16.mxu0 0
        %890 = vmatpush2.bf16.msra.mxu0 0
        %891 = vmatprep.subr.bf16.mxu0 0
        %892 = vmatpush2.bf16.msra.mxu0 0
        %893 = vmatprep.subr.bf16.mxu0 0
        %894 = vmatpush2.bf16.msra.mxu0 0
        %895 = vmatprep.subr.bf16.mxu0 0
        %896 = vmatpush2.bf16.msra.mxu0 0
        %897 = vmatprep.subr.bf16.mxu0 0
        %898 = vmatpush2.bf16.msra.mxu0 0
        %899 = vmatprep.subr.bf16.mxu0 0
        %900 = vmatpush2.bf16.msra.mxu0 0
        %901 = vmatprep.subr.bf16.mxu0 0
        %902 = vmatpush2.bf16.msra.mxu0 0
        %903 = vmatprep.subr.bf16.mxu0 0
        %904 = vmatpush2.bf16.msra.mxu0 0
        %905 = vmatprep.mubr.bf16.mxu0 0
        %906 = vmatmul.mubr.bf16.gmra.mxu0 %v786
        %v907 = vpop.f32.mrf.mxu0
        %v908 = vadd.f32 %v823, %v907
        %v909 = vpop.f32.mrf.mxu0
        %v910 = vpop.f32.mrf.mxu0
        %v911 = vadd.f32 %v823, %v910
        %v912 = vpop.f32.mrf.mxu0
        %913 = vmatprep.mubr.bf16.mxu0 0
        %914 = vmatmul.mubr.bf16.gmra.mxu0 %v787
        %v915 = vpop.f32.mrf.mxu0
        %v916 = vadd.f32 %v823, %v915
        %v917 = vpop.f32.mrf.mxu0
        %v918 = vpop.f32.mrf.mxu0
        %v919 = vadd.f32 %v823, %v918
        %v920 = vpop.f32.mrf.mxu0
        %921 = vmatprep.mubr.bf16.mxu0 0
        %922 = vmatmul.mubr.bf16.gmra.mxu0 %v788
        %v923 = vpop.f32.mrf.mxu0
        %v924 = vadd.f32 %v823, %v923
        %v925 = vpop.f32.mrf.mxu0
        %v926 = vpop.f32.mrf.mxu0
        %v927 = vadd.f32 %v823, %v926
        %v928 = vpop.f32.mrf.mxu0
        %929 = vmatprep.mubr.bf16.mxu0 0
        %930 = vmatmul.mubr.bf16.gmra.mxu0 %v789
        %v931 = vpop.f32.mrf.mxu0
        %v932 = vadd.f32 %v823, %v931
        %v933 = vpop.f32.mrf.mxu0
        %v934 = vpop.f32.mrf.mxu0
        %v935 = vadd.f32 %v823, %v934
        %v936 = vpop.f32.mrf.mxu0
        %937 = vmatprep.mubr.bf16.mxu0 0
        %938 = vmatmul.mubr.bf16.gmra.mxu0 %v790
        %v939 = vpop.f32.mrf.mxu0
        %v940 = vadd.f32 %v823, %v939
        %v941 = vpop.f32.mrf.mxu0
        %v942 = vpop.f32.mrf.mxu0
        %v943 = vadd.f32 %v823, %v942
        %v944 = vpop.f32.mrf.mxu0
        %945 = vmatprep.mubr.bf16.mxu0 0
        %946 = vmatmul.mubr.bf16.gmra.mxu0 %v791
        %v947 = vpop.f32.mrf.mxu0
        %v948 = vadd.f32 %v823, %v947
        %v949 = vpop.f32.mrf.mxu0
        %v950 = vpop.f32.mrf.mxu0
        %v951 = vadd.f32 %v823, %v950
        %v952 = vpop.f32.mrf.mxu0
        %953 = vmatprep.mubr.bf16.mxu0 0
        %954 = vmatmul.mubr.bf16.gmra.mxu0 %v792
        %v955 = vpop.f32.mrf.mxu0
        %v956 = vadd.f32 %v823, %v955
        %v957 = vpop.f32.mrf.mxu0
        %v958 = vpop.f32.mrf.mxu0
        %v959 = vadd.f32 %v823, %v958
        %v960 = vpop.f32.mrf.mxu0
        %961 = vmatprep.mubr.bf16.mxu0 0
        %962 = vmatmul.mubr.bf16.gmra.mxu0 %v793
        %v963 = vpop.f32.mrf.mxu0
        %v964 = vadd.f32 %v823, %v963
        %v965 = vpop.f32.mrf.mxu0
        %v966 = vpop.f32.mrf.mxu0
        %v967 = vadd.f32 %v823, %v966
        %v968 = vpop.f32.mrf.mxu0
        %969 = vmatprep.mubr.bf16.mxu0 0
        %970 = vmatmul.mubr.bf16.gmra.mxu0 %v794
        %v971 = vpop.f32.mrf.mxu0
        %v972 = vadd.f32 %v823, %v971
        %v973 = vpop.f32.mrf.mxu0
        %v974 = vpop.f32.mrf.mxu0
        %v975 = vadd.f32 %v823, %v974
        %v976 = vpop.f32.mrf.mxu0
        %977 = vmatprep.mubr.bf16.mxu0 0
        %978 = vmatmul.mubr.bf16.gmra.mxu0 %v795
        %v979 = vpop.f32.mrf.mxu0
        %v980 = vadd.f32 %v823, %v979
        %v981 = vpop.f32.mrf.mxu0
        %v982 = vpop.f32.mrf.mxu0
        %v983 = vadd.f32 %v823, %v982
        %v984 = vpop.f32.mrf.mxu0
        %985 = vmatprep.mubr.bf16.mxu0 0
        %986 = vmatmul.mubr.bf16.gmra.mxu0 %v796
        %v987 = vpop.f32.mrf.mxu0
        %v988 = vadd.f32 %v823, %v987
        %v989 = vpop.f32.mrf.mxu0
        %v990 = vpop.f32.mrf.mxu0
        %v991 = vadd.f32 %v823, %v990
        %v992 = vpop.f32.mrf.mxu0
        %993 = vmatprep.mubr.bf16.mxu0 0
        %994 = vmatmul.mubr.bf16.gmra.mxu0 %v797
        %v995 = vpop.f32.mrf.mxu0
        %v996 = vadd.f32 %v823, %v995
        %v997 = vpop.f32.mrf.mxu0
        %v998 = vpop.f32.mrf.mxu0
        %v999 = vadd.f32 %v823, %v998
        %v1000 = vpop.f32.mrf.mxu0
        %1001 = vmatprep.mubr.bf16.mxu0 0
        %1002 = vmatmul.mubr.bf16.gmra.mxu0 %v798
        %v1003 = vpop.f32.mrf.mxu0
        %v1004 = vadd.f32 %v823, %v1003
        %v1005 = vpop.f32.mrf.mxu0
        %v1006 = vpop.f32.mrf.mxu0
        %v1007 = vadd.f32 %v823, %v1006
        %v1008 = vpop.f32.mrf.mxu0
        %1009 = vmatprep.mubr.bf16.mxu0 0
        %1010 = vmatmul.mubr.bf16.gmra.mxu0 %v799
        %v1011 = vpop.f32.mrf.mxu0
        %v1012 = vadd.f32 %v823, %v1011
        %v1013 = vpop.f32.mrf.mxu0
        %v1014 = vpop.f32.mrf.mxu0
        %v1015 = vadd.f32 %v823, %v1014
        %v1016 = vpop.f32.mrf.mxu0
        %1017 = vmatprep.mubr.bf16.mxu0 0
        %1018 = vmatmul.mubr.bf16.gmra.mxu0 %v800
        %v1019 = vpop.f32.mrf.mxu0
        %v1020 = vadd.f32 %v823, %v1019
        %v1021 = vpop.f32.mrf.mxu0
        %v1022 = vpop.f32.mrf.mxu0
        %v1023 = vadd.f32 %v823, %v1022
        %v1024 = vpop.f32.mrf.mxu0
        %1025 = vmatprep.mubr.bf16.mxu0 0
        %1026 = vmatmul.mubr.bf16.gmra.mxu0 %v801
        %v1027 = vpop.f32.mrf.mxu0
        %v1028 = vadd.f32 %v823, %v1027
        %v1029 = vpop.f32.mrf.mxu0
        %v1030 = vpop.f32.mrf.mxu0
        %v1031 = vadd.f32 %v823, %v1030
        %v1032 = vpop.f32.mrf.mxu0
        %1033 = vdwg.mxu0
        %vm1034 = vcmp.gt.f32.partialorder %v908, 0.0
        %vm1035 = vcmp.gt.f32.partialorder %v911, 0.0
        %vm1036 = vcmp.gt.f32.partialorder %v916, 0.0
        %vm1037 = vcmp.gt.f32.partialorder %v919, 0.0
        %vm1038 = vcmp.gt.f32.partialorder %v924, 0.0
        %vm1039 = vcmp.gt.f32.partialorder %v927, 0.0
        %vm1040 = vcmp.gt.f32.partialorder %v932, 0.0
        %vm1041 = vcmp.gt.f32.partialorder %v935, 0.0
        %vm1042 = vcmp.gt.f32.partialorder %v940, 0.0
        %vm1043 = vcmp.gt.f32.partialorder %v943, 0.0
        %vm1044 = vcmp.gt.f32.partialorder %v948, 0.0
        %vm1045 = vcmp.gt.f32.partialorder %v951, 0.0
        %vm1046 = vcmp.gt.f32.partialorder %v956, 0.0
        %vm1047 = vcmp.gt.f32.partialorder %v959, 0.0
        %vm1048 = vcmp.gt.f32.partialorder %v964, 0.0
        %vm1049 = vcmp.gt.f32.partialorder %v967, 0.0
        %vm1050 = vcmp.gt.f32.partialorder %v972, 0.0
        %vm1051 = vcmp.gt.f32.partialorder %v975, 0.0
        %vm1052 = vcmp.gt.f32.partialorder %v980, 0.0
        %vm1053 = vcmp.gt.f32.partialorder %v983, 0.0
        %vm1054 = vcmp.gt.f32.partialorder %v988, 0.0
        %vm1055 = vcmp.gt.f32.partialorder %v991, 0.0
        %vm1056 = vcmp.gt.f32.partialorder %v996, 0.0
        %vm1057 = vcmp.gt.f32.partialorder %v999, 0.0
        %vm1058 = vcmp.gt.f32.partialorder %v1004, 0.0
        %vm1059 = vcmp.gt.f32.partialorder %v1007, 0.0
        %vm1060 = vcmp.gt.f32.partialorder %v1012, 0.0
        %vm1061 = vcmp.gt.f32.partialorder %v1015, 0.0
        %vm1062 = vcmp.gt.f32.partialorder %v1020, 0.0
        %vm1063 = vcmp.gt.f32.partialorder %v1023, 0.0
        %vm1064 = vcmp.gt.f32.partialorder %v1028, 0.0
        %vm1065 = vcmp.gt.f32.partialorder %v1031, 0.0
        %v1066 = vmul.f32 %v908, 0.01
        %v1067 = vmul.f32 %v911, 0.01
        %v1068 = vmul.f32 %v916, 0.01
        %v1069 = vmul.f32 %v919, 0.01
        %v1070 = vmul.f32 %v924, 0.01
        %v1071 = vmul.f32 %v927, 0.01
        %v1072 = vmul.f32 %v932, 0.01
        %v1073 = vmul.f32 %v935, 0.01
        %v1074 = vmul.f32 %v940, 0.01
        %v1075 = vmul.f32 %v943, 0.01
        %v1076 = vmul.f32 %v948, 0.01
        %v1077 = vmul.f32 %v951, 0.01
        %v1078 = vmul.f32 %v956, 0.01
        %v1079 = vmul.f32 %v959, 0.01
        %v1080 = vmul.f32 %v964, 0.01
        %v1081 = vmul.f32 %v967, 0.01
        %v1082 = vmul.f32 %v972, 0.01
        %v1083 = vmul.f32 %v975, 0.01
        %v1084 = vmul.f32 %v980, 0.01
        %v1085 = vmul.f32 %v983, 0.01
        %v1086 = vmul.f32 %v988, 0.01
        %v1087 = vmul.f32 %v991, 0.01
        %v1088 = vmul.f32 %v996, 0.01
        %v1089 = vmul.f32 %v999, 0.01
        %v1090 = vmul.f32 %v1004, 0.01
        %v1091 = vmul.f32 %v1007, 0.01
        %v1092 = vmul.f32 %v1012, 0.01
        %v1093 = vmul.f32 %v1015, 0.01
        %v1094 = vmul.f32 %v1020, 0.01
        %v1095 = vmul.f32 %v1023, 0.01
        %v1096 = vmul.f32 %v1028, 0.01
        %v1097 = vmul.f32 %v1031, 0.01
        %v1098 = vsel %vm1034, %v908, %v1066
        %v1099 = vsel %vm1035, %v911, %v1067
        %v1100 = vsel %vm1036, %v916, %v1068
        %v1101 = vsel %vm1037, %v919, %v1069
        %v1102 = vsel %vm1038, %v924, %v1070
        %v1103 = vsel %vm1039, %v927, %v1071
        %v1104 = vsel %vm1040, %v932, %v1072
        %v1105 = vsel %vm1041, %v935, %v1073
        %v1106 = vsel %vm1042, %v940, %v1074
        %v1107 = vsel %vm1043, %v943, %v1075
        %v1108 = vsel %vm1044, %v948, %v1076
        %v1109 = vsel %vm1045, %v951, %v1077
        %v1110 = vsel %vm1046, %v956, %v1078
        %v1111 = vsel %vm1047, %v959, %v1079
        %v1112 = vsel %vm1048, %v964, %v1080
        %v1113 = vsel %vm1049, %v967, %v1081
        %v1114 = vsel %vm1050, %v972, %v1082
        %v1115 = vsel %vm1051, %v975, %v1083
        %v1116 = vsel %vm1052, %v980, %v1084
        %v1117 = vsel %vm1053, %v983, %v1085
        %v1118 = vsel %vm1054, %v988, %v1086
        %v1119 = vsel %vm1055, %v991, %v1087
        %v1120 = vsel %vm1056, %v996, %v1088
        %v1121 = vsel %vm1057, %v999, %v1089
        %v1122 = vsel %vm1058, %v1004, %v1090
        %v1123 = vsel %vm1059, %v1007, %v1091
        %v1124 = vsel %vm1060, %v1012, %v1092
        %v1125 = vsel %vm1061, %v1015, %v1093
        %v1126 = vsel %vm1062, %v1020, %v1094
        %v1127 = vsel %vm1063, %v1023, %v1095
        %v1128 = vsel %vm1064, %v1028, %v1096
        %v1129 = vsel %vm1065, %v1031, %v1097
        %v1130 = vpack.c.bf16 %v1099, %v1098
        %v1131 = vpack.c.bf16 %v1101, %v1100
        %v1132 = vpack.c.bf16 %v1103, %v1102
        %v1133 = vpack.c.bf16 %v1105, %v1104
        %v1134 = vpack.c.bf16 %v1107, %v1106
        %v1135 = vpack.c.bf16 %v1109, %v1108
        %v1136 = vpack.c.bf16 %v1111, %v1110
        %v1137 = vpack.c.bf16 %v1113, %v1112
        %v1138 = vpack.c.bf16 %v1115, %v1114
        %v1139 = vpack.c.bf16 %v1117, %v1116
        %v1140 = vpack.c.bf16 %v1119, %v1118
        %v1141 = vpack.c.bf16 %v1121, %v1120
        %v1142 = vpack.c.bf16 %v1123, %v1122
        %v1143 = vpack.c.bf16 %v1125, %v1124
        %v1144 = vpack.c.bf16 %v1127, %v1126
        %v1145 = vpack.c.bf16 %v1129, %v1128
        %v1146 = vld [vmem:[#allocation8] sm:$0xf]
        %v1147 = vld [vmem:[#allocation8 + $0x4] sm:$0xf]
        %v1148 = vld [vmem:[#allocation8 + $0x8] sm:$0xf]
        %v1149 = vld [vmem:[#allocation8 + $0xc] sm:$0xf]
        %v1150 = vld [vmem:[#allocation8 + $0x10] sm:$0xf]
        %v1151 = vld [vmem:[#allocation8 + $0x14] sm:$0xf]
        %v1152 = vld [vmem:[#allocation8 + $0x18] sm:$0xf]
        %v1153 = vld [vmem:[#allocation8 + $0x1c] sm:$0xf]
        %v1154 = vld [vmem:[#allocation8 + $0x20] sm:$0xf]
        %v1155 = vld [vmem:[#allocation8 + $0x24] sm:$0xf]
        %v1156 = vld [vmem:[#allocation8 + $0x28] sm:$0xf]
        %v1157 = vld [vmem:[#allocation8 + $0x2c] sm:$0xf]
        %v1158 = vld [vmem:[#allocation8 + $0x30] sm:$0xf]
        %v1159 = vld [vmem:[#allocation8 + $0x34] sm:$0xf]
        %v1160 = vld [vmem:[#allocation8 + $0x38] sm:$0xf]
        %v1161 = vld [vmem:[#allocation8 + $0x3c] sm:$0xf]
        %v1162 = vld [vmem:[%s6] sm:$0x1]
        %v1164 = vlaneseq
        %v1165 = vshrl.u32 %v1164, 7
        %v1166 = vsub.s32 0, %v1165
        %v1167 = vrot.slane %v1162, %v1166
        %v1185 = vunpack.c.l.b16 %v1146
        %v1186 = vunpack.c.l.b16 %v1147
        %v1187 = vunpack.c.l.b16 %v1148
        %v1188 = vunpack.c.l.b16 %v1149
        %v1189 = vunpack.c.l.b16 %v1150
        %v1190 = vunpack.c.l.b16 %v1151
        %v1191 = vunpack.c.l.b16 %v1152
        %v1192 = vunpack.c.l.b16 %v1153
        %v1193 = vunpack.c.l.b16 %v1154
        %v1194 = vunpack.c.l.b16 %v1155
        %v1195 = vunpack.c.l.b16 %v1156
        %v1196 = vunpack.c.l.b16 %v1157
        %v1197 = vunpack.c.l.b16 %v1158
        %v1198 = vunpack.c.l.b16 %v1159
        %v1199 = vunpack.c.l.b16 %v1160
        %v1200 = vunpack.c.l.b16 %v1161
        %v1201 = vpack.c.b16 %v1186, %v1185
        %v1202 = vpack.c.b16 %v1188, %v1187
        %v1203 = vpack.c.b16 %v1190, %v1189
        %v1204 = vpack.c.b16 %v1192, %v1191
        %v1205 = vpack.c.b16 %v1194, %v1193
        %v1206 = vpack.c.b16 %v1196, %v1195
        %v1207 = vpack.c.b16 %v1198, %v1197
        %v1208 = vpack.c.b16 %v1200, %v1199
        %1217 = vmatprep.subr.bf16.mxu0 0
        %1218 = vmatpush1.bf16.msra.mxu0 %v1208
        %1219 = vmatprep.subr.bf16.mxu0 0
        %1220 = vmatpush1.bf16.msra.mxu0 %v1207
        %1221 = vmatprep.subr.bf16.mxu0 0
        %1222 = vmatpush1.bf16.msra.mxu0 %v1206
        %1223 = vmatprep.subr.bf16.mxu0 0
        %1224 = vmatpush1.bf16.msra.mxu0 %v1205
        %1225 = vmatprep.subr.bf16.mxu0 0
        %1226 = vmatpush1.bf16.msra.mxu0 %v1204
        %1227 = vmatprep.subr.bf16.mxu0 0
        %1228 = vmatpush1.bf16.msra.mxu0 %v1203
        %1229 = vmatprep.subr.bf16.mxu0 0
        %1230 = vmatpush1.bf16.msra.mxu0 %v1202
        %1231 = vmatprep.subr.bf16.mxu0 0
        %1232 = vmatpush1.bf16.msra.mxu0 %v1201
        %1233 = vmatprep.subr.bf16.mxu0 0
        %1234 = vmatpush2.bf16.msra.mxu0 0
        %1235 = vmatprep.subr.bf16.mxu0 0
        %1236 = vmatpush2.bf16.msra.mxu0 0
        %1237 = vmatprep.subr.bf16.mxu0 0
        %1238 = vmatpush2.bf16.msra.mxu0 0
        %1239 = vmatprep.subr.bf16.mxu0 0
        %1240 = vmatpush2.bf16.msra.mxu0 0
        %1241 = vmatprep.subr.bf16.mxu0 0
        %1242 = vmatpush2.bf16.msra.mxu0 0
        %1243 = vmatprep.subr.bf16.mxu0 0
        %1244 = vmatpush2.bf16.msra.mxu0 0
        %1245 = vmatprep.subr.bf16.mxu0 0
        %1246 = vmatpush2.bf16.msra.mxu0 0
        %1247 = vmatprep.subr.bf16.mxu0 0
        %1248 = vmatpush2.bf16.msra.mxu0 0
        %1249 = vmatprep.mubr.bf16.mxu0 0
        %1250 = vmatmul.mubr.bf16.gmra.mxu0 %v1130
        %v1251 = vpop.f32.mrf.mxu0
        %v1252 = vadd.f32 %v1167, %v1251
        %v1253 = vpop.f32.mrf.mxu0
        %v1254 = vpop.f32.mrf.mxu0
        %v1255 = vadd.f32 %v1167, %v1254
        %v1256 = vpop.f32.mrf.mxu0
        %1257 = vmatprep.mubr.bf16.mxu0 0
        %1258 = vmatmul.mubr.bf16.gmra.mxu0 %v1131
        %v1259 = vpop.f32.mrf.mxu0
        %v1260 = vadd.f32 %v1167, %v1259
        %v1261 = vpop.f32.mrf.mxu0
        %v1262 = vpop.f32.mrf.mxu0
        %v1263 = vadd.f32 %v1167, %v1262
        %v1264 = vpop.f32.mrf.mxu0
        %1265 = vmatprep.mubr.bf16.mxu0 0
        %1266 = vmatmul.mubr.bf16.gmra.mxu0 %v1132
        %v1267 = vpop.f32.mrf.mxu0
        %v1268 = vadd.f32 %v1167, %v1267
        %v1269 = vpop.f32.mrf.mxu0
        %v1270 = vpop.f32.mrf.mxu0
        %v1271 = vadd.f32 %v1167, %v1270
        %v1272 = vpop.f32.mrf.mxu0
        %1273 = vmatprep.mubr.bf16.mxu0 0
        %1274 = vmatmul.mubr.bf16.gmra.mxu0 %v1133
        %v1275 = vpop.f32.mrf.mxu0
        %v1276 = vadd.f32 %v1167, %v1275
        %v1277 = vpop.f32.mrf.mxu0
        %v1278 = vpop.f32.mrf.mxu0
        %v1279 = vadd.f32 %v1167, %v1278
        %v1280 = vpop.f32.mrf.mxu0
        %1281 = vmatprep.mubr.bf16.mxu0 0
        %1282 = vmatmul.mubr.bf16.gmra.mxu0 %v1134
        %v1283 = vpop.f32.mrf.mxu0
        %v1284 = vadd.f32 %v1167, %v1283
        %v1285 = vpop.f32.mrf.mxu0
        %v1286 = vpop.f32.mrf.mxu0
        %v1287 = vadd.f32 %v1167, %v1286
        %v1288 = vpop.f32.mrf.mxu0
        %1289 = vmatprep.mubr.bf16.mxu0 0
        %1290 = vmatmul.mubr.bf16.gmra.mxu0 %v1135
        %v1291 = vpop.f32.mrf.mxu0
        %v1292 = vadd.f32 %v1167, %v1291
        %v1293 = vpop.f32.mrf.mxu0
        %v1294 = vpop.f32.mrf.mxu0
        %v1295 = vadd.f32 %v1167, %v1294
        %v1296 = vpop.f32.mrf.mxu0
        %1297 = vmatprep.mubr.bf16.mxu0 0
        %1298 = vmatmul.mubr.bf16.gmra.mxu0 %v1136
        %v1299 = vpop.f32.mrf.mxu0
        %v1300 = vadd.f32 %v1167, %v1299
        %v1301 = vpop.f32.mrf.mxu0
        %v1302 = vpop.f32.mrf.mxu0
        %v1303 = vadd.f32 %v1167, %v1302
        %v1304 = vpop.f32.mrf.mxu0
        %1305 = vmatprep.mubr.bf16.mxu0 0
        %1306 = vmatmul.mubr.bf16.gmra.mxu0 %v1137
        %v1307 = vpop.f32.mrf.mxu0
        %v1308 = vadd.f32 %v1167, %v1307
        %v1309 = vpop.f32.mrf.mxu0
        %v1310 = vpop.f32.mrf.mxu0
        %v1311 = vadd.f32 %v1167, %v1310
        %v1312 = vpop.f32.mrf.mxu0
        %1313 = vmatprep.mubr.bf16.mxu0 0
        %1314 = vmatmul.mubr.bf16.gmra.mxu0 %v1138
        %v1315 = vpop.f32.mrf.mxu0
        %v1316 = vadd.f32 %v1167, %v1315
        %v1317 = vpop.f32.mrf.mxu0
        %v1318 = vpop.f32.mrf.mxu0
        %v1319 = vadd.f32 %v1167, %v1318
        %v1320 = vpop.f32.mrf.mxu0
        %1321 = vmatprep.mubr.bf16.mxu0 0
        %1322 = vmatmul.mubr.bf16.gmra.mxu0 %v1139
        %v1323 = vpop.f32.mrf.mxu0
        %v1324 = vadd.f32 %v1167, %v1323
        %v1325 = vpop.f32.mrf.mxu0
        %v1326 = vpop.f32.mrf.mxu0
        %v1327 = vadd.f32 %v1167, %v1326
        %v1328 = vpop.f32.mrf.mxu0
        %1329 = vmatprep.mubr.bf16.mxu0 0
        %1330 = vmatmul.mubr.bf16.gmra.mxu0 %v1140
        %v1331 = vpop.f32.mrf.mxu0
        %v1332 = vadd.f32 %v1167, %v1331
        %v1333 = vpop.f32.mrf.mxu0
        %v1334 = vpop.f32.mrf.mxu0
        %v1335 = vadd.f32 %v1167, %v1334
        %v1336 = vpop.f32.mrf.mxu0
        %1337 = vmatprep.mubr.bf16.mxu0 0
        %1338 = vmatmul.mubr.bf16.gmra.mxu0 %v1141
        %v1339 = vpop.f32.mrf.mxu0
        %v1340 = vadd.f32 %v1167, %v1339
        %v1341 = vpop.f32.mrf.mxu0
        %v1342 = vpop.f32.mrf.mxu0
        %v1343 = vadd.f32 %v1167, %v1342
        %v1344 = vpop.f32.mrf.mxu0
        %1345 = vmatprep.mubr.bf16.mxu0 0
        %1346 = vmatmul.mubr.bf16.gmra.mxu0 %v1142
        %v1347 = vpop.f32.mrf.mxu0
        %v1348 = vadd.f32 %v1167, %v1347
        %v1349 = vpop.f32.mrf.mxu0
        %v1350 = vpop.f32.mrf.mxu0
        %v1351 = vadd.f32 %v1167, %v1350
        %v1352 = vpop.f32.mrf.mxu0
        %1353 = vmatprep.mubr.bf16.mxu0 0
        %1354 = vmatmul.mubr.bf16.gmra.mxu0 %v1143
        %v1355 = vpop.f32.mrf.mxu0
        %v1356 = vadd.f32 %v1167, %v1355
        %v1357 = vpop.f32.mrf.mxu0
        %v1358 = vpop.f32.mrf.mxu0
        %v1359 = vadd.f32 %v1167, %v1358
        %v1360 = vpop.f32.mrf.mxu0
        %1361 = vmatprep.mubr.bf16.mxu0 0
        %1362 = vmatmul.mubr.bf16.gmra.mxu0 %v1144
        %v1363 = vpop.f32.mrf.mxu0
        %v1364 = vadd.f32 %v1167, %v1363
        %v1365 = vpop.f32.mrf.mxu0
        %v1366 = vpop.f32.mrf.mxu0
        %v1367 = vadd.f32 %v1167, %v1366
        %v1368 = vpop.f32.mrf.mxu0
        %1369 = vmatprep.mubr.bf16.mxu0 0
        %1370 = vmatmul.mubr.bf16.gmra.mxu0 %v1145
        %v1371 = vpop.f32.mrf.mxu0
        %v1372 = vadd.f32 %v1167, %v1371
        %v1373 = vpop.f32.mrf.mxu0
        %v1374 = vpop.f32.mrf.mxu0
        %v1375 = vadd.f32 %v1167, %v1374
        %v1376 = vpop.f32.mrf.mxu0
        %1377 = vdwg.mxu0
        %vm1378 = vcmp.gt.f32.partialorder %v1252, 0.0
        %vm1379 = vcmp.gt.f32.partialorder %v1255, 0.0
        %vm1380 = vcmp.gt.f32.partialorder %v1260, 0.0
        %vm1381 = vcmp.gt.f32.partialorder %v1263, 0.0
        %vm1382 = vcmp.gt.f32.partialorder %v1268, 0.0
        %vm1383 = vcmp.gt.f32.partialorder %v1271, 0.0
        %vm1384 = vcmp.gt.f32.partialorder %v1276, 0.0
        %vm1385 = vcmp.gt.f32.partialorder %v1279, 0.0
        %vm1386 = vcmp.gt.f32.partialorder %v1284, 0.0
        %vm1387 = vcmp.gt.f32.partialorder %v1287, 0.0
        %vm1388 = vcmp.gt.f32.partialorder %v1292, 0.0
        %vm1389 = vcmp.gt.f32.partialorder %v1295, 0.0
        %vm1390 = vcmp.gt.f32.partialorder %v1300, 0.0
        %vm1391 = vcmp.gt.f32.partialorder %v1303, 0.0
        %vm1392 = vcmp.gt.f32.partialorder %v1308, 0.0
        %vm1393 = vcmp.gt.f32.partialorder %v1311, 0.0
        %vm1394 = vcmp.gt.f32.partialorder %v1316, 0.0
        %vm1395 = vcmp.gt.f32.partialorder %v1319, 0.0
        %vm1396 = vcmp.gt.f32.partialorder %v1324, 0.0
        %vm1397 = vcmp.gt.f32.partialorder %v1327, 0.0
        %vm1398 = vcmp.gt.f32.partialorder %v1332, 0.0
        %vm1399 = vcmp.gt.f32.partialorder %v1335, 0.0
        %vm1400 = vcmp.gt.f32.partialorder %v1340, 0.0
        %vm1401 = vcmp.gt.f32.partialorder %v1343, 0.0
        %vm1402 = vcmp.gt.f32.partialorder %v1348, 0.0
        %vm1403 = vcmp.gt.f32.partialorder %v1351, 0.0
        %vm1404 = vcmp.gt.f32.partialorder %v1356, 0.0
        %vm1405 = vcmp.gt.f32.partialorder %v1359, 0.0
        %vm1406 = vcmp.gt.f32.partialorder %v1364, 0.0
        %vm1407 = vcmp.gt.f32.partialorder %v1367, 0.0
        %vm1408 = vcmp.gt.f32.partialorder %v1372, 0.0
        %vm1409 = vcmp.gt.f32.partialorder %v1375, 0.0
        %v1410 = vmul.f32 %v1252, 0.01
        %v1411 = vmul.f32 %v1255, 0.01
        %v1412 = vmul.f32 %v1260, 0.01
        %v1413 = vmul.f32 %v1263, 0.01
        %v1414 = vmul.f32 %v1268, 0.01
        %v1415 = vmul.f32 %v1271, 0.01
        %v1416 = vmul.f32 %v1276, 0.01
        %v1417 = vmul.f32 %v1279, 0.01
        %v1418 = vmul.f32 %v1284, 0.01
        %v1419 = vmul.f32 %v1287, 0.01
        %v1420 = vmul.f32 %v1292, 0.01
        %v1421 = vmul.f32 %v1295, 0.01
        %v1422 = vmul.f32 %v1300, 0.01
        %v1423 = vmul.f32 %v1303, 0.01
        %v1424 = vmul.f32 %v1308, 0.01
        %v1425 = vmul.f32 %v1311, 0.01
        %v1426 = vmul.f32 %v1316, 0.01
        %v1427 = vmul.f32 %v1319, 0.01
        %v1428 = vmul.f32 %v1324, 0.01
        %v1429 = vmul.f32 %v1327, 0.01
        %v1430 = vmul.f32 %v1332, 0.01
        %v1431 = vmul.f32 %v1335, 0.01
        %v1432 = vmul.f32 %v1340, 0.01
        %v1433 = vmul.f32 %v1343, 0.01
        %v1434 = vmul.f32 %v1348, 0.01
        %v1435 = vmul.f32 %v1351, 0.01
        %v1436 = vmul.f32 %v1356, 0.01
        %v1437 = vmul.f32 %v1359, 0.01
        %v1438 = vmul.f32 %v1364, 0.01
        %v1439 = vmul.f32 %v1367, 0.01
        %v1440 = vmul.f32 %v1372, 0.01
        %v1441 = vmul.f32 %v1375, 0.01
        %v1442 = vsel %vm1378, %v1252, %v1410
        %v1443 = vsel %vm1379, %v1255, %v1411
        %v1444 = vsel %vm1380, %v1260, %v1412
        %v1445 = vsel %vm1381, %v1263, %v1413
        %v1446 = vsel %vm1382, %v1268, %v1414
        %v1447 = vsel %vm1383, %v1271, %v1415
        %v1448 = vsel %vm1384, %v1276, %v1416
        %v1449 = vsel %vm1385, %v1279, %v1417
        %v1450 = vsel %vm1386, %v1284, %v1418
        %v1451 = vsel %vm1387, %v1287, %v1419
        %v1452 = vsel %vm1388, %v1292, %v1420
        %v1453 = vsel %vm1389, %v1295, %v1421
        %v1454 = vsel %vm1390, %v1300, %v1422
        %v1455 = vsel %vm1391, %v1303, %v1423
        %v1456 = vsel %vm1392, %v1308, %v1424
        %v1457 = vsel %vm1393, %v1311, %v1425
        %v1458 = vsel %vm1394, %v1316, %v1426
        %v1459 = vsel %vm1395, %v1319, %v1427
        %v1460 = vsel %vm1396, %v1324, %v1428
        %v1461 = vsel %vm1397, %v1327, %v1429
        %v1462 = vsel %vm1398, %v1332, %v1430
        %v1463 = vsel %vm1399, %v1335, %v1431
        %v1464 = vsel %vm1400, %v1340, %v1432
        %v1465 = vsel %vm1401, %v1343, %v1433
        %v1466 = vsel %vm1402, %v1348, %v1434
        %v1467 = vsel %vm1403, %v1351, %v1435
        %v1468 = vsel %vm1404, %v1356, %v1436
        %v1469 = vsel %vm1405, %v1359, %v1437
        %v1470 = vsel %vm1406, %v1364, %v1438
        %v1471 = vsel %vm1407, %v1367, %v1439
        %v1472 = vsel %vm1408, %v1372, %v1440
        %v1473 = vsel %vm1409, %v1375, %v1441
        %v1474 = vpack.c.bf16 %v1443, %v1442
        %v1475 = vpack.c.bf16 %v1445, %v1444
        %v1476 = vpack.c.bf16 %v1447, %v1446
        %v1477 = vpack.c.bf16 %v1449, %v1448
        %v1478 = vpack.c.bf16 %v1451, %v1450
        %v1479 = vpack.c.bf16 %v1453, %v1452
        %v1480 = vpack.c.bf16 %v1455, %v1454
        %v1481 = vpack.c.bf16 %v1457, %v1456
        %v1482 = vpack.c.bf16 %v1459, %v1458
        %v1483 = vpack.c.bf16 %v1461, %v1460
        %v1484 = vpack.c.bf16 %v1463, %v1462
        %v1485 = vpack.c.bf16 %v1465, %v1464
        %v1486 = vpack.c.bf16 %v1467, %v1466
        %v1487 = vpack.c.bf16 %v1469, %v1468
        %v1488 = vpack.c.bf16 %v1471, %v1470
        %v1489 = vpack.c.bf16 %v1473, %v1472
        %v1490 = vld [vmem:[%s7] sm:$0xf]
        %v1491 = vld [vmem:[%s7 + $0x4] sm:$0xf]
        %v1494 = vunpack.c.l.b16 %v1490
        %v1495 = vunpack.c.l.b16 %v1491
        %v1496 = vpack.c.b16 %v1495, %v1494
        %1498 = vmatprep.subr.bf16.mxu0 0
        %1499 = vmatpush1.bf16.xpose.msra.mxu0 %v1481
        %1500 = vmatprep.subr.bf16.mxu0 0
        %1501 = vmatpush1.bf16.xpose.msra.mxu0 %v1480
        %1502 = vmatprep.subr.bf16.mxu0 0
        %1503 = vmatpush1.bf16.xpose.msra.mxu0 %v1479
        %1504 = vmatprep.subr.bf16.mxu0 0
        %1505 = vmatpush1.bf16.xpose.msra.mxu0 %v1478
        %1506 = vmatprep.subr.bf16.mxu0 0
        %1507 = vmatpush1.bf16.xpose.msra.mxu0 %v1477
        %1508 = vmatprep.subr.bf16.mxu0 0
        %1509 = vmatpush1.bf16.xpose.msra.mxu0 %v1476
        %1510 = vmatprep.subr.bf16.mxu0 0
        %1511 = vmatpush1.bf16.xpose.msra.mxu0 %v1475
        %1512 = vmatprep.subr.bf16.mxu0 0
        %1513 = vmatpush1.bf16.xpose.msra.mxu0 %v1474
        %1514 = vmatprep.subr.bf16.mxu0 0
        %1515 = vmatpush2.bf16.xpose.msra.mxu0 %v1489
        %1516 = vmatprep.subr.bf16.mxu0 0
        %1517 = vmatpush2.bf16.xpose.msra.mxu0 %v1488
        %1518 = vmatprep.subr.bf16.mxu0 0
        %1519 = vmatpush2.bf16.xpose.msra.mxu0 %v1487
        %1520 = vmatprep.subr.bf16.mxu0 0
        %1521 = vmatpush2.bf16.xpose.msra.mxu0 %v1486
        %1522 = vmatprep.subr.bf16.mxu0 0
        %1523 = vmatpush2.bf16.xpose.msra.mxu0 %v1485
        %1524 = vmatprep.subr.bf16.mxu0 0
        %1525 = vmatpush2.bf16.xpose.msra.mxu0 %v1484
        %1526 = vmatprep.subr.bf16.mxu0 0
        %1527 = vmatpush2.bf16.xpose.msra.mxu0 %v1483
        %1528 = vmatprep.subr.bf16.mxu0 0
        %1529 = vmatpush2.bf16.xpose.msra.mxu0 %v1482
        %1530 = vmatprep.mubr.bf16.mxu0 0
        %1531 = vmatmul.mubr.bf16.gmra.mxu0 %v1496
        %v1532 = vpop.f32.mrf.mxu0
        %v1533 = vadd.f32 0.0, %v1532
        %v1534 = vpop.f32.mrf.mxu0
        %v1535 = vadd.f32 0.0, %v1534
        %v1536 = vpop.f32.mrf.mxu0
        %v1537 = vpop.f32.mrf.mxu0
        %1538 = vdwg.mxu0
        %v1539 = vld [vmem:[#allocation2] sm:$0x1]
        %1541 = vset.pattern.permute.xlu0 0
        %1542 = vperm.xlu0 %1541, %v1539
        %v1543 = vpop.permute.xlu0 %1542
        %v1545 = vlaneseq
        %v1546 = vshrl.u32 %v1545, 7
        %v1547 = vsub.s32 0, %v1546
        %v1548 = vrot.slane %v1543, %v1547
        %v1549 = vadd.f32 %v1533, %v1548
        %v1550 = vadd.f32 %v1535, %v1548
        %v1553 = vcombine.low %v1549, %v1550
        %v1555 = vunpack.c.l.s4 1966171168
        %v1556 = vunpack.c.0.s8 %v1555
        %v1557 = vlaneseq
        %v1558 = vshrl.u32 %v1557, 7
        %v1559 = vsub.s32 %v1556, %v1558
        %v1560 = vrot.slane %v1553, %v1559
        %v1562 = vunpack.c.l.s4 1966171168
        %v1563 = vunpack.c.0.s8 %v1562
        %v1564 = vlaneseq
        %v1565 = vshrl.u32 %v1564, 7
        %v1566 = vsub.s32 %v1563, %v1565
        %v1567 = vrot.slane %v1560, %v1566
        %v1569 = vlaneseq
        %vm1570 = vcmp.ge.s32.totalorder %v1569, 0
        %vm1571 = vcmp.lt.s32.totalorder %v1569, 256
        %vm1572 = vmand %vm1570, %vm1571
        %1573 = vst.msk [vmem:[%s407] sm:$0x3] %vm1572, %v1567
        %s1574 = smul.u32 2, %s27
        %p1575 = scmp.lt.s32.totalorder %s1574, 3
        %s1576 = scalar_select %p1575, %s1574, 3
        %s1577 = scalar_lea.vmem %s9, %s1576
        // Predicated region
        $region73: #{verifying_sd_forward.1} parent=55 // pred_check
          %p1578 = pneg %p239
        $region74: #{verifying_sd_forward.1} parent=55 // pred_check_branch
          %1580 = sbr.rel (%p1578) target = $region76
        $region75: #{verifying_sd_forward.1} parent=55 // pred_region
          %s1581 = smul.u32 2, %s27
        $region76: #{verifying_sd_forward.1} parent=55 // pred_fallthru
          _
      $region56: #{verifying_sd_forward.1} parent=5 // pred_fallthru
        _
      %p1582 = scmp.le.s32.totalorder 2, %s22
      // Predicated region
      $region77: #{verifying_sd_forward.1} parent=5 // pred_check
        %p1583 = pneg %p1582
      $region78: #{verifying_sd_forward.1} parent=5 // pred_check_branch
        %1585 = sbr.rel (%p1583) target = $region80
      $region79: #{verifying_sd_forward.1} parent=5 // pred_region
        %s1586 = ssub.s32 %s22, 2
        // Predicated region
        $region81: #{verifying_sd_forward.1} parent=79 // pred_check
          %p1587 = pneg %p245
        $region82: #{verifying_sd_forward.1} parent=79 // pred_check_branch
          %1589 = sbr.rel (%p1587) target = $region84
        $region83: #{verifying_sd_forward.1} parent=79 // pred_region
          %s1590 = smul.u32 2, %s28
          %p1591 = scmp.lt.s32.totalorder %s1590, 3
          %s1592 = scalar_select %p1591, %s1590, 3
          %s1593 = scalar_lea.vmem %s9, %s1592
        $region84: #{verifying_sd_forward.1} parent=79 // pred_fallthru
          _
      $region80: #{verifying_sd_forward.1} parent=5 // pred_fallthru
        _
    $region6: #{verifying_sd_forward.1} parent=1 // loop_footer
      %s26 = sadd.s32 1, %s22
    $region7: #{verifying_sd_forward.1} parent=1 // loop_footer_branch
      %21 = sbr.rel target = $region3
    $region8: #{verifying_sd_forward.1} parent=1 // loop_exit
      _
    %1594 = vsyncpa [#allocation4], 1
    %s1595 = scalar_lea.sflag [#allocation4], 1
    %1596 = vsyncpa %s1595, 1
    %1597 = vsyncpa [#allocation6], 1
    %1598 = vsyncpa [#allocation9], 1

</llo_original>
